<compile_context>
chip_gen: v7x
topology: tpu7x:2x2x1
jax: 0.10.0
libtpu: 0.0.40
codegen_flags: <defaults>
</compile_context>

<pallas_src>
import functools

import numpy as np
import jax
import jax.numpy as jnp
from jax.experimental import pallas as pl
from jax.experimental.pallas import tpu as pltpu


# --------------------------------------------------------------------------- #
# One-time parameter packing (all transposes / permutations hoisted here)
# --------------------------------------------------------------------------- #
def _conv1d_as_matrix(w, length_in, stride, padding):
    """Dense matrix for PyTorch Conv1d on position-major flattened activations.

    w: (Cout, Cin, K).  Returns M of shape (L_in*Cin, L_out*Cout) with input flat
    index p*Cin+ci and output flat index i*Cout+co so that x_flat @ M == conv(x).
    """
    w = np.asarray(w, np.float32)
    c_out, c_in, k = w.shape
    length_out = (length_in + 2 * padding - k) // stride + 1
    mat = np.zeros((length_in * c_in, length_out * c_out), np.float32)
    for i in range(length_out):
        for t in range(k):
            p = i * stride + t - padding
            if 0 <= p < length_in:
                mat[p * c_in:(p + 1) * c_in, i * c_out:(i + 1) * c_out] += w[:, :, t].T
    return mat


def _conv_transpose1d_as_matrix(w, length_in, stride, padding):
    """Dense matrix for PyTorch ConvTranspose1d (w layout (Cin, Cout, K))."""
    w = np.asarray(w, np.float32)
    c_in, c_out, k = w.shape
    length_out = (length_in - 1) * stride - 2 * padding + k
    mat = np.zeros((length_in * c_in, length_out * c_out), np.float32)
    for j in range(length_in):
        for t in range(k):
            o = j * stride + t - padding
            if 0 <= o < length_out:
                mat[j * c_in:(j + 1) * c_in, o * c_out:(o + 1) * c_out] += w[:, :, t]
    return mat


def pack_params(params, seq_length, latent_dim, *, weight_dtype=jnp.bfloat16):
    """One-time conversion of PyTorch-layout params into matmul-ready VMEM blobs.

    Matmul weights are stored in bf16 (native MXU path, half the HBM/VMEM bytes);
    biases stay f32 (added post-accumulation).
    """
    l2, l4 = seq_length // 2, seq_length // 4
    wd = lambda a: jnp.asarray(np.asarray(a, np.float32), weight_dtype)
    f32 = lambda a: np.asarray(a, np.float32)
    row = lambda a: jnp.asarray(np.asarray(a, np.float32).reshape(1, -1), jnp.float32)

    # Encoder convs as dense position-major matrices (+ per-position tiled biases).
    m1 = wd(_conv1d_as_matrix(params["conv1_w"], seq_length, 2, 1))       # (L, L2*32)
    b1 = row(np.tile(f32(params["conv1_b"]), l2))
    m2 = wd(_conv1d_as_matrix(params["conv2_w"], l2, 2, 1))               # (L2*32, L4*64)
    b2 = row(np.tile(f32(params["conv2_b"]), l4))

    # fc1: permute input columns from PyTorch's channel-major flatten (c*L4+l)
    # to our position-major layout (l*64+c); store matmul-ready (K, N).
    fc1_w = f32(params["fc1_w"])                                          # (256, 64*L4)
    fc1_wm = wd(np.transpose(fc1_w.reshape(256, 64, l4), (2, 1, 0)).reshape(l4 * 64, 256))

    # fc_mean | fc_logvar merged into a single (256, 2Z) matmul.
    mv_w = wd(np.concatenate([f32(params["fc_mean_w"]).T,
                              f32(params["fc_logvar_w"]).T], axis=1))     # (256, 2Z)
    mv_b = row(np.concatenate([f32(params["fc_mean_b"]), f32(params["fc_logvar_b"])]))

    din_w = wd(f32(params["dec_in_w"]).T)                                 # (Z, 256)

    # decoder fc: permute OUTPUT columns so its result is already position-major.
    dec_w = f32(params["dec_w"])                                          # (64*L4, 256)
    dec_wm = wd(np.transpose(dec_w.reshape(64, l4, 256), (2, 1, 0)).reshape(256, l4 * 64))
    dec_bm = row(np.transpose(f32(params["dec_b"]).reshape(64, l4)).reshape(1, l4 * 64))

    d1 = wd(_conv_transpose1d_as_matrix(params["deconv1_w"], l4, 2, 1))   # (L4*64, L2*32)
    d1_b = row(np.tile(f32(params["deconv1_b"]), l2))
    d2 = wd(_conv_transpose1d_as_matrix(params["deconv2_w"], l2, 2, 1))   # (L2*32, L)
    d2_b = row(np.tile(f32(params["deconv2_b"]), seq_length))

    return {
        "m1": m1, "b1": b1, "m2": m2, "b2": b2,
        "fc1_w": fc1_wm, "fc1_b": row(params["fc1_b"]),
        "mv_w": mv_w, "mv_b": mv_b,
        "din_w": din_w, "din_b": row(params["dec_in_b"]),
        "dec_w": dec_wm, "dec_b": dec_bm,
        "d1_w": d1, "d1_b": d1_b, "d2_w": d2, "d2_b": d2_b,
    }


# --------------------------------------------------------------------------- #
# The fused Pallas kernel: whole ConvVAE forward for one batch tile, all in VMEM.
# --------------------------------------------------------------------------- #
def _vae_kernel(x_ref, eps_ref,
                m1_ref, b1_ref, m2_ref, b2_ref,
                fc1_w_ref, fc1_b_ref, mv_w_ref, mv_b_ref,
                din_w_ref, din_b_ref, dec_w_ref, dec_b_ref,
                d1_w_ref, d1_b_ref, d2_w_ref, d2_b_ref,
                recon_ref, mv_ref, *, latent_dim):
    def mm(a, w_ref, b_ref):
        # bf16 x bf16 MXU matmul with f32 accumulation, f32 bias add.
        w = w_ref[...]
        return jnp.dot(a.astype(w.dtype), w,
                       preferred_element_type=jnp.float32) + b_ref[...]

    relu = lambda v: jnp.maximum(v, 0.0)

    # -------- encoder --------
    h = relu(mm(x_ref[...], m1_ref, b1_ref))      # conv1 + ReLU      (Bt, L/2*32)
    h = relu(mm(h, m2_ref, b2_ref))               # conv2 + ReLU      (Bt, L/4*64) == flatten
    h = relu(mm(h, fc1_w_ref, fc1_b_ref))         # fc1 + ReLU        (Bt, 256)
    mv = mm(h, mv_w_ref, mv_b_ref)                # fc_mean|fc_logvar (Bt, 2Z)
    mv_ref[...] = mv                              # single lane-dense output; split outside

    # -------- reparameterize (eps supplied externally, deterministic) --------
    mu = mv[:, :latent_dim]
    logvar = mv[:, latent_dim:]
    z = mu + eps_ref[...] * jnp.exp(0.5 * logvar)

    # -------- decoder --------
    h = relu(mm(z, din_w_ref, din_b_ref))         # decoder_input + ReLU (Bt, 256)
    h = relu(mm(h, dec_w_ref, dec_b_ref))         # decoder fc + ReLU    (Bt, L/4*64)
    h = relu(mm(h, d1_w_ref, d1_b_ref))           # deconv1 + ReLU       (Bt, L/2*32)
    y = mm(h, d2_w_ref, d2_b_ref)                 # deconv2              (Bt, L)
    # sigmoid: reciprocal on the (otherwise idle) EUP slot instead of a VALU divide
    recon_ref[...] = pl.reciprocal(1.0 + jnp.exp(-y), approx=True)


# --------------------------------------------------------------------------- #
# Wrapper: batch grid + resident weights
# --------------------------------------------------------------------------- #
def _round_up(n, m):
    return (n + m - 1) // m * m


def _vmem_limit_bytes(weights, batch_tile, seq_length, latent_dim):
    """Derive the scoped-VMEM request from the actual packed footprint."""
    w_bytes = sum(int(np.prod(w.shape)) * w.dtype.itemsize for w in weights)
    # Per-batch-tile I/O blocks (x bf16; eps / recon / mv f32), double-buffered.
    io_bytes = batch_tile * (2 * seq_length + 4 * (latent_dim + seq_length + 2 * latent_dim))
    # Largest live f32 intermediates inside the body: a few (Bt, L/4*64)-ish tiles.
    act_bytes = 6 * batch_tile * max((seq_length // 4) * 64, 256) * 4
    need = w_bytes + 2 * io_bytes + act_bytes + (4 << 20)
    # Clamp to something every generation tolerates (v7x has 64 MiB physical VMEM).
    return int(min(64 << 20, max(16 << 20, need)))


def conv_vae_forward(packed, x, eps, *, batch_tile=128):
    """x: (B, 1, L) f32, eps: (B, Z) f32 -> (recon (B,1,L), mu (B,Z), logvar (B,Z)).

    batch_tile is the MXU M dimension per grid step: >=128 (256 on v6e/v7x) is what
    fills the MXU rows; small batches are padded up to a sublane-aligned tile.
    """
    b = x.shape[0]
    seq_length = packed["m1"].shape[0]
    latent_dim = eps.shape[1]

    bt = min(batch_tile, _round_up(b, 8))      # sublane-aligned batch tile
    b_pad = _round_up(b, bt)
    num_tiles = b_pad // bt

    x2d = jnp.asarray(x, jnp.float32).reshape(b, seq_length).astype(jnp.bfloat16)
    eps32 = jnp.asarray(eps, jnp.float32)
    if b_pad != b:
        x2d = jnp.pad(x2d, ((0, b_pad - b), (0, 0)))
        eps32 = jnp.pad(eps32, ((0, b_pad - b), (0, 0)))

    def batch_spec(cols):
        # Blocked along the batch grid axis.
        return pl.BlockSpec((bt, cols), lambda i: (i, 0))

    def resident_spec(shape):
        # Weight blocks never change across the batch grid: constant index_map
        # (DMA'd once, stays resident) + single buffering (no wasted second copy).
        return pl.BlockSpec(shape, lambda i: (0,) * len(shape),
                            pipeline_mode=pl.Buffered(1))

    order = ["m1", "b1", "m2", "b2", "fc1_w", "fc1_b", "mv_w", "mv_b",
             "din_w", "din_b", "dec_w", "dec_b", "d1_w", "d1_b", "d2_w", "d2_b"]
    weights = [packed[k] for k in order]

    in_specs = [batch_spec(seq_length), batch_spec(latent_dim)]
    in_specs += [resident_spec(w.shape) for w in weights]

    recon2d, mv = pl.pallas_call(
        functools.partial(_vae_kernel, latent_dim=latent_dim),
        grid=(num_tiles,),
        out_shape=(jax.ShapeDtypeStruct((b_pad, seq_length), jnp.float32),
                   jax.ShapeDtypeStruct((b_pad, 2 * latent_dim), jnp.float32)),
        in_specs=in_specs,
        out_specs=(batch_spec(seq_length), batch_spec(2 * latent_dim)),
        compiler_params=pltpu.CompilerParams(
            dimension_semantics=("parallel",),   # v7x: split batch tiles over both TCs
            vmem_limit_bytes=_vmem_limit_bytes(weights, bt, seq_length, latent_dim)),
    )(x2d, eps32, *weights)

    recon = recon2d[:b].reshape(b, 1, seq_length)
    mu = mv[:b, :latent_dim]
    logvar = mv[:b, latent_dim:]
    return recon, mu, logvar


# --------------------------------------------------------------------------- #
# Deterministic synthetic init (PyTorch shape conventions)
# --------------------------------------------------------------------------- #
def init_params(key, seq_length, latent_dim):
    conv_out = (seq_length // 4) * 64
    ks = jax.random.split(key, 20)

    def rnd(k, shape, fan_in):
        return jax.random.normal(k, shape, jnp.float32) / jnp.sqrt(jnp.float32(fan_in))

    return {
        "conv1_w": rnd(ks[0], (32, 1, 4), 4),           "conv1_b": rnd(ks[1], (32,), 4),
        "conv2_w": rnd(ks[2], (64, 32, 4), 128),        "conv2_b": rnd(ks[3], (64,), 128),
        "fc1_w": rnd(ks[4], (256, conv_out), conv_out), "fc1_b": rnd(ks[5], (256,), conv_out),
        "fc_mean_w": rnd(ks[6], (latent_dim, 256), 256),
        "fc_mean_b": rnd(ks[7], (latent_dim,), 256),
        "fc_logvar_w": rnd(ks[8], (latent_dim, 256), 256),
        "fc_logvar_b": rnd(ks[9], (latent_dim,), 256),
        "dec_in_w": rnd(ks[10], (256, latent_dim), latent_dim),
        "dec_in_b": rnd(ks[11], (256,), latent_dim),
        "dec_w": rnd(ks[12], (conv_out, 256), 256),     "dec_b": rnd(ks[13], (conv_out,), 256),
        "deconv1_w": rnd(ks[14], (64, 32, 4), 256),     "deconv1_b": rnd(ks[15], (32,), 256),
        "deconv2_w": rnd(ks[16], (32, 1, 4), 128),      "deconv2_b": rnd(ks[17], (1,), 128),
    }


# --------------------------------------------------------------------------- #
# Pure-numpy reference (PyTorch ConvVAE semantics) for a sanity check
# --------------------------------------------------------------------------- #
def _reference_forward(params, x, eps, seq_length, latent_dim):
    p = {k: np.asarray(v, np.float32) for k, v in params.items()}
    xn = np.asarray(x, np.float32)
    en = np.asarray(eps, np.float32)

    def conv1d(inp, w, b, stride, pad):
        bsz, _, length = inp.shape
        c_out, _, k = w.shape
        l_out = (length + 2 * pad - k) // stride + 1
        xp = np.pad(inp, ((0, 0), (0, 0), (pad, pad)))
        out = np.zeros((bsz, c_out, l_out), np.float32)
        for i in range(l_out):
            seg = xp[:, :, i * stride:i * stride + k]
            out[:, :, i] = np.einsum("bck,ock->bo", seg, w) + b
        return out

    def conv_transpose1d(inp, w, b, stride, pad):
        bsz, _, length = inp.shape
        _, c_out, k = w.shape
        l_out = (length - 1) * stride - 2 * pad + k
        full = np.zeros((bsz, c_out, (length - 1) * stride + k), np.float32)
        for j in range(length):
            full[:, :, j * stride:j * stride + k] += np.einsum("bc,cok->bok", inp[:, :, j], w)
        return full[:, :, pad:pad + l_out] + b[None, :, None]

    relu = lambda v: np.maximum(v, 0.0)
    h = relu(conv1d(xn, p["conv1_w"], p["conv1_b"], 2, 1))
    h = relu(conv1d(h, p["conv2_w"], p["conv2_b"], 2, 1))
    flat = h.reshape(h.shape[0], -1)
    h = relu(flat @ p["fc1_w"].T + p["fc1_b"])
    mu = h @ p["fc_mean_w"].T + p["fc_mean_b"]
    logvar = h @ p["fc_logvar_w"].T + p["fc_logvar_b"]
    z = mu + en * np.exp(0.5 * logvar)
    h = relu(z @ p["dec_in_w"].T + p["dec_in_b"])
    h = relu(h @ p["dec_w"].T + p["dec_b"])
    d = h.reshape(-1, 64, seq_length // 4)
    y = relu(conv_transpose1d(d, p["deconv1_w"], p["deconv1_b"], 2, 1))
    recon = 1.0 / (1.0 + np.exp(-conv_transpose1d(y, p["deconv2_w"], p["deconv2_b"], 2, 1)))
    return recon, mu, logvar


# --------------------------------------------------------------------------- #
if __name__ == "__main__":
    seq_length, latent_dim, batch = 16, 8, 2

    root = jax.random.PRNGKey(0)
    k_params, k_x, k_eps, k_xb, k_eb = jax.random.split(root, 5)

    params = init_params(k_params, seq_length, latent_dim)
    packed = pack_params(params, seq_length, latent_dim)        # one-time layout prep

    x = jax.random.normal(k_x, (batch, 1, seq_length), jnp.float32)   # NCW
    eps = jax.random.normal(k_eps, (batch, latent_dim), jnp.float32)  # reparam noise

    fwd = jax.jit(conv_vae_forward)
    recon, mu, logvar = fwd(packed, x, eps)
    jax.block_until_ready((recon, mu, logvar))

    assert recon.shape == (batch, 1, seq_length)
    assert mu.shape == (batch, latent_dim)
    assert logvar.shape == (batch, latent_dim)

    # Sanity check against a plain-numpy PyTorch-semantics reference (tolerance is
    # loose to allow the bf16 MXU weight / activation rounding).
    ref_recon, ref_mu, ref_logvar = _reference_forward(params, x, eps, seq_length, latent_dim)
    np.testing.assert_allclose(np.asarray(recon), ref_recon, rtol=0.12, atol=0.06)
    np.testing.assert_allclose(np.asarray(mu), ref_mu, rtol=0.12, atol=0.06)
    np.testing.assert_allclose(np.asarray(logvar), ref_logvar, rtol=0.12, atol=0.06)

    # Throughput-shaped run: 256 rows -> two parallel 128-row batch tiles.
    # Exercises the batch grid, resident (single-buffered) weight BlockSpecs and the
    # "parallel" dimension semantics (2 TCs on v7x).
    big = 256
    xb = jax.random.normal(k_xb, (big, 1, seq_length), jnp.float32)
    eb = jax.random.normal(k_eb, (big, latent_dim), jnp.float32)
    rb, mb, lb = fwd(packed, xb, eb)
    jax.block_until_ready((rb, mb, lb))
    assert rb.shape == (big, 1, seq_length)
    assert mb.shape == (big, latent_dim) and lb.shape == (big, latent_dim)
    assert bool(jnp.all(jnp.isfinite(rb)))
    assert bool(jnp.all(jnp.isfinite(mb))) and bool(jnp.all(jnp.isfinite(lb)))

    print("KERNEL_OK")
</pallas_src>

<mosaic_0001>
module attributes {stable_mosaic.version = 11 : i64} {
  func.func @_vae_kernel(%arg0: i32, %arg1: memref<8x16xbf16, #tpu.memory_space<vmem>>, %arg2: memref<8x8xf32, #tpu.memory_space<vmem>>, %arg3: memref<16x256xbf16, #tpu.memory_space<vmem>>, %arg4: memref<1x256xf32, #tpu.memory_space<vmem>>, %arg5: memref<256x256xbf16, #tpu.memory_space<vmem>>, %arg6: memref<1x256xf32, #tpu.memory_space<vmem>>, %arg7: memref<256x256xbf16, #tpu.memory_space<vmem>>, %arg8: memref<1x256xf32, #tpu.memory_space<vmem>>, %arg9: memref<256x16xbf16, #tpu.memory_space<vmem>>, %arg10: memref<1x16xf32, #tpu.memory_space<vmem>>, %arg11: memref<8x256xbf16, #tpu.memory_space<vmem>>, %arg12: memref<1x256xf32, #tpu.memory_space<vmem>>, %arg13: memref<256x256xbf16, #tpu.memory_space<vmem>>, %arg14: memref<1x256xf32, #tpu.memory_space<vmem>>, %arg15: memref<256x256xbf16, #tpu.memory_space<vmem>>, %arg16: memref<1x256xf32, #tpu.memory_space<vmem>>, %arg17: memref<256x16xbf16, #tpu.memory_space<vmem>>, %arg18: memref<1x16xf32, #tpu.memory_space<vmem>>, %arg19: memref<8x16xf32, #tpu.memory_space<vmem>>, %arg20: memref<8x16xf32, #tpu.memory_space<vmem>>) attributes {dimension_semantics = [#tpu.dimension_semantics<parallel>], iteration_bounds = array<i64: 1>, scalar_prefetch = 0 : i64, scratch_operands = 0 : i64, tpu.core_type = #tpu.core_type<tc>, window_params = [{transform_indices = @transform_0, window_bounds = array<i64: 8, 16>}, {transform_indices = @transform_1, window_bounds = array<i64: 8, 8>}, {pipeline_mode = #tpu.pipeline_mode<synchronous>, transform_indices = @transform_2, window_bounds = array<i64: 16, 256>}, {pipeline_mode = #tpu.pipeline_mode<synchronous>, transform_indices = @transform_3, window_bounds = array<i64: 1, 256>}, {pipeline_mode = #tpu.pipeline_mode<synchronous>, transform_indices = @transform_4, window_bounds = array<i64: 256, 256>}, {pipeline_mode = #tpu.pipeline_mode<synchronous>, transform_indices = @transform_5, window_bounds = array<i64: 1, 256>}, {pipeline_mode = #tpu.pipeline_mode<synchronous>, transform_indices = @transform_6, window_bounds = array<i64: 256, 256>}, {pipeline_mode = #tpu.pipeline_mode<synchronous>, transform_indices = @transform_7, window_bounds = array<i64: 1, 256>}, {pipeline_mode = #tpu.pipeline_mode<synchronous>, transform_indices = @transform_8, window_bounds = array<i64: 256, 16>}, {pipeline_mode = #tpu.pipeline_mode<synchronous>, transform_indices = @transform_9, window_bounds = array<i64: 1, 16>}, {pipeline_mode = #tpu.pipeline_mode<synchronous>, transform_indices = @transform_10, window_bounds = array<i64: 8, 256>}, {pipeline_mode = #tpu.pipeline_mode<synchronous>, transform_indices = @transform_11, window_bounds = array<i64: 1, 256>}, {pipeline_mode = #tpu.pipeline_mode<synchronous>, transform_indices = @transform_12, window_bounds = array<i64: 256, 256>}, {pipeline_mode = #tpu.pipeline_mode<synchronous>, transform_indices = @transform_13, window_bounds = array<i64: 1, 256>}, {pipeline_mode = #tpu.pipeline_mode<synchronous>, transform_indices = @transform_14, window_bounds = array<i64: 256, 256>}, {pipeline_mode = #tpu.pipeline_mode<synchronous>, transform_indices = @transform_15, window_bounds = array<i64: 1, 256>}, {pipeline_mode = #tpu.pipeline_mode<synchronous>, transform_indices = @transform_16, window_bounds = array<i64: 256, 16>}, {pipeline_mode = #tpu.pipeline_mode<synchronous>, transform_indices = @transform_17, window_bounds = array<i64: 1, 16>}, {transform_indices = @transform_18, window_bounds = array<i64: 8, 16>}, {transform_indices = @transform_19, window_bounds = array<i64: 8, 16>}]} {
    %c0 = arith.constant 0 : index
    %c0_0 = arith.constant 0 : index
    %0 = vector.load %arg1[%c0, %c0_0] : memref<8x16xbf16, #tpu.memory_space<vmem>>, vector<8x16xbf16>
    %c0_1 = arith.constant 0 : index
    %c0_2 = arith.constant 0 : index
    %1 = vector.load %arg3[%c0_1, %c0_2] : memref<16x256xbf16, #tpu.memory_space<vmem>>, vector<16x256xbf16>
    %cst = arith.constant dense<0.000000e+00> : vector<8x256xf32>
    %2 = tpu.matmul %0, %1, %cst {dimension_numbers = #tpu.dot_dimension_numbers<[1], [0], [0], [1], [0, 0, 1, 1], [], []>} : vector<8x16xbf16>, vector<16x256xbf16>, vector<8x256xf32> -> vector<8x256xf32>
    %c0_3 = arith.constant 0 : index
    %c0_4 = arith.constant 0 : index
    %3 = vector.load %arg4[%c0_3, %c0_4] : memref<1x256xf32, #tpu.memory_space<vmem>>, vector<1x256xf32>
    %4 = vector.broadcast %3 : vector<1x256xf32> to vector<8x256xf32>
    %5 = arith.addf %2, %4 : vector<8x256xf32>
    %cst_5 = arith.constant 0.000000e+00 : f32
    %6 = vector.broadcast %cst_5 : f32 to vector<8x256xf32>
    %7 = arith.maximumf %5, %6 : vector<8x256xf32>
    %c0_6 = arith.constant 0 : index
    %c0_7 = arith.constant 0 : index
    %8 = vector.load %arg5[%c0_6, %c0_7] : memref<256x256xbf16, #tpu.memory_space<vmem>>, vector<256x256xbf16>
    %9 = arith.truncf %7 : vector<8x256xf32> to vector<8x256xbf16>
    %cst_8 = arith.constant dense<0.000000e+00> : vector<8x256xf32>
    %10 = tpu.matmul %9, %8, %cst_8 {dimension_numbers = #tpu.dot_dimension_numbers<[1], [0], [0], [1], [0, 0, 1, 1], [], []>} : vector<8x256xbf16>, vector<256x256xbf16>, vector<8x256xf32> -> vector<8x256xf32>
    %c0_9 = arith.constant 0 : index
    %c0_10 = arith.constant 0 : index
    %11 = vector.load %arg6[%c0_9, %c0_10] : memref<1x256xf32, #tpu.memory_space<vmem>>, vector<1x256xf32>
    %12 = vector.broadcast %11 : vector<1x256xf32> to vector<8x256xf32>
    %13 = arith.addf %10, %12 : vector<8x256xf32>
    %cst_11 = arith.constant 0.000000e+00 : f32
    %14 = vector.broadcast %cst_11 : f32 to vector<8x256xf32>
    %15 = arith.maximumf %13, %14 : vector<8x256xf32>
    %c0_12 = arith.constant 0 : index
    %c0_13 = arith.constant 0 : index
    %16 = vector.load %arg7[%c0_12, %c0_13] : memref<256x256xbf16, #tpu.memory_space<vmem>>, vector<256x256xbf16>
    %17 = arith.truncf %15 : vector<8x256xf32> to vector<8x256xbf16>
    %cst_14 = arith.constant dense<0.000000e+00> : vector<8x256xf32>
    %18 = tpu.matmul %17, %16, %cst_14 {dimension_numbers = #tpu.dot_dimension_numbers<[1], [0], [0], [1], [0, 0, 1, 1], [], []>} : vector<8x256xbf16>, vector<256x256xbf16>, vector<8x256xf32> -> vector<8x256xf32>
    %c0_15 = arith.constant 0 : index
    %c0_16 = arith.constant 0 : index
    %19 = vector.load %arg8[%c0_15, %c0_16] : memref<1x256xf32, #tpu.memory_space<vmem>>, vector<1x256xf32>
    %20 = vector.broadcast %19 : vector<1x256xf32> to vector<8x256xf32>
    %21 = arith.addf %18, %20 : vector<8x256xf32>
    %cst_17 = arith.constant 0.000000e+00 : f32
    %22 = vector.broadcast %cst_17 : f32 to vector<8x256xf32>
    %23 = arith.maximumf %21, %22 : vector<8x256xf32>
    %c0_18 = arith.constant 0 : index
    %c0_19 = arith.constant 0 : index
    %24 = vector.load %arg9[%c0_18, %c0_19] : memref<256x16xbf16, #tpu.memory_space<vmem>>, vector<256x16xbf16>
    %25 = arith.truncf %23 : vector<8x256xf32> to vector<8x256xbf16>
    %cst_20 = arith.constant dense<0.000000e+00> : vector<8x16xf32>
    %26 = tpu.matmul %25, %24, %cst_20 {dimension_numbers = #tpu.dot_dimension_numbers<[1], [0], [0], [1], [0, 0, 1, 1], [], []>} : vector<8x256xbf16>, vector<256x16xbf16>, vector<8x16xf32> -> vector<8x16xf32>
    %c0_21 = arith.constant 0 : index
    %c0_22 = arith.constant 0 : index
    %27 = vector.load %arg10[%c0_21, %c0_22] : memref<1x16xf32, #tpu.memory_space<vmem>>, vector<1x16xf32>
    %28 = vector.broadcast %27 : vector<1x16xf32> to vector<8x16xf32>
    %29 = arith.addf %26, %28 : vector<8x16xf32>
    %c0_23 = arith.constant 0 : index
    %c0_24 = arith.constant 0 : index
    %30 = vector.load %arg20[%c0_23, %c0_24] : memref<8x16xf32, #tpu.memory_space<vmem>>, vector<8x16xf32>
    tpu.vector_store %arg20[%c0_23, %c0_24], %29 {strides = array<i32>} : memref<8x16xf32, #tpu.memory_space<vmem>>, vector<8x16xf32>,
    %31 = vector.extract_strided_slice %29 {offsets = [0, 0], sizes = [8, 8], strides = [1, 1]} : vector<8x16xf32> to vector<8x8xf32>
    %32 = vector.extract_strided_slice %29 {offsets = [0, 8], sizes = [8, 8], strides = [1, 1]} : vector<8x16xf32> to vector<8x8xf32>
    %c0_25 = arith.constant 0 : index
    %c0_26 = arith.constant 0 : index
    %33 = vector.load %arg2[%c0_25, %c0_26] : memref<8x8xf32, #tpu.memory_space<vmem>>, vector<8x8xf32>
    %cst_27 = arith.constant 5.000000e-01 : f32
    %34 = vector.broadcast %cst_27 : f32 to vector<8x8xf32>
    %35 = arith.mulf %34, %32 : vector<8x8xf32>
    %36 = math.exp %35 : vector<8x8xf32>
    %37 = arith.mulf %33, %36 : vector<8x8xf32>
    %38 = arith.addf %31, %37 : vector<8x8xf32>
    %c0_28 = arith.constant 0 : index
    %c0_29 = arith.constant 0 : index
    %39 = vector.load %arg11[%c0_28, %c0_29] : memref<8x256xbf16, #tpu.memory_space<vmem>>, vector<8x256xbf16>
    %40 = arith.truncf %38 : vector<8x8xf32> to vector<8x8xbf16>
    %cst_30 = arith.constant dense<0.000000e+00> : vector<8x256xf32>
    %41 = tpu.matmul %40, %39, %cst_30 {dimension_numbers = #tpu.dot_dimension_numbers<[1], [0], [0], [1], [0, 0, 1, 1], [], []>} : vector<8x8xbf16>, vector<8x256xbf16>, vector<8x256xf32> -> vector<8x256xf32>
    %c0_31 = arith.constant 0 : index
    %c0_32 = arith.constant 0 : index
    %42 = vector.load %arg12[%c0_31, %c0_32] : memref<1x256xf32, #tpu.memory_space<vmem>>, vector<1x256xf32>
    %43 = vector.broadcast %42 : vector<1x256xf32> to vector<8x256xf32>
    %44 = arith.addf %41, %43 : vector<8x256xf32>
    %cst_33 = arith.constant 0.000000e+00 : f32
    %45 = vector.broadcast %cst_33 : f32 to vector<8x256xf32>
    %46 = arith.maximumf %44, %45 : vector<8x256xf32>
    %c0_34 = arith.constant 0 : index
    %c0_35 = arith.constant 0 : index
    %47 = vector.load %arg13[%c0_34, %c0_35] : memref<256x256xbf16, #tpu.memory_space<vmem>>, vector<256x256xbf16>
    %48 = arith.truncf %46 : vector<8x256xf32> to vector<8x256xbf16>
    %cst_36 = arith.constant dense<0.000000e+00> : vector<8x256xf32>
    %49 = tpu.matmul %48, %47, %cst_36 {dimension_numbers = #tpu.dot_dimension_numbers<[1], [0], [0], [1], [0, 0, 1, 1], [], []>} : vector<8x256xbf16>, vector<256x256xbf16>, vector<8x256xf32> -> vector<8x256xf32>
    %c0_37 = arith.constant 0 : index
    %c0_38 = arith.constant 0 : index
    %50 = vector.load %arg14[%c0_37, %c0_38] : memref<1x256xf32, #tpu.memory_space<vmem>>, vector<1x256xf32>
    %51 = vector.broadcast %50 : vector<1x256xf32> to vector<8x256xf32>
    %52 = arith.addf %49, %51 : vector<8x256xf32>
    %cst_39 = arith.constant 0.000000e+00 : f32
    %53 = vector.broadcast %cst_39 : f32 to vector<8x256xf32>
    %54 = arith.maximumf %52, %53 : vector<8x256xf32>
    %c0_40 = arith.constant 0 : index
    %c0_41 = arith.constant 0 : index
    %55 = vector.load %arg15[%c0_40, %c0_41] : memref<256x256xbf16, #tpu.memory_space<vmem>>, vector<256x256xbf16>
    %56 = arith.truncf %54 : vector<8x256xf32> to vector<8x256xbf16>
    %cst_42 = arith.constant dense<0.000000e+00> : vector<8x256xf32>
    %57 = tpu.matmul %56, %55, %cst_42 {dimension_numbers = #tpu.dot_dimension_numbers<[1], [0], [0], [1], [0, 0, 1, 1], [], []>} : vector<8x256xbf16>, vector<256x256xbf16>, vector<8x256xf32> -> vector<8x256xf32>
    %c0_43 = arith.constant 0 : index
    %c0_44 = arith.constant 0 : index
    %58 = vector.load %arg16[%c0_43, %c0_44] : memref<1x256xf32, #tpu.memory_space<vmem>>, vector<1x256xf32>
    %59 = vector.broadcast %58 : vector<1x256xf32> to vector<8x256xf32>
    %60 = arith.addf %57, %59 : vector<8x256xf32>
    %cst_45 = arith.constant 0.000000e+00 : f32
    %61 = vector.broadcast %cst_45 : f32 to vector<8x256xf32>
    %62 = arith.maximumf %60, %61 : vector<8x256xf32>
    %c0_46 = arith.constant 0 : index
    %c0_47 = arith.constant 0 : index
    %63 = vector.load %arg17[%c0_46, %c0_47] : memref<256x16xbf16, #tpu.memory_space<vmem>>, vector<256x16xbf16>
    %64 = arith.truncf %62 : vector<8x256xf32> to vector<8x256xbf16>
    %cst_48 = arith.constant dense<0.000000e+00> : vector<8x16xf32>
    %65 = tpu.matmul %64, %63, %cst_48 {dimension_numbers = #tpu.dot_dimension_numbers<[1], [0], [0], [1], [0, 0, 1, 1], [], []>} : vector<8x256xbf16>, vector<256x16xbf16>, vector<8x16xf32> -> vector<8x16xf32>
    %c0_49 = arith.constant 0 : index
    %c0_50 = arith.constant 0 : index
    %66 = vector.load %arg18[%c0_49, %c0_50] : memref<1x16xf32, #tpu.memory_space<vmem>>, vector<1x16xf32>
    %67 = vector.broadcast %66 : vector<1x16xf32> to vector<8x16xf32>
    %68 = arith.addf %65, %67 : vector<8x16xf32>
    %cst_51 = arith.constant 0.000000e+00 : f32
    %69 = vector.broadcast %cst_51 : f32 to vector<8x16xf32>
    %70 = arith.subf %69, %68 : vector<8x16xf32>
    %71 = math.exp %70 : vector<8x16xf32>
    %cst_52 = arith.constant 1.000000e+00 : f32
    %72 = vector.broadcast %cst_52 : f32 to vector<8x16xf32>
    %73 = arith.addf %72, %71 : vector<8x16xf32>
    %74 = tpu.reciprocal %73 {approx = true} : vector<8x16xf32> -> vector<8x16xf32>
    %c0_53 = arith.constant 0 : index
    %c0_54 = arith.constant 0 : index
    %75 = vector.load %arg19[%c0_53, %c0_54] : memref<8x16xf32, #tpu.memory_space<vmem>>, vector<8x16xf32>
    tpu.vector_store %arg19[%c0_53, %c0_54], %74 {strides = array<i32>} : memref<8x16xf32, #tpu.memory_space<vmem>>, vector<8x16xf32>,
    return
  }
  func.func @transform_0(%arg0: i32) -> (i32, i32) {
    %c0_i32 = arith.constant 0 : i32
    %c0_i32_0 = arith.constant 0 : i32
    return %arg0, %c0_i32 : i32, i32
  }
  func.func @transform_1(%arg0: i32) -> (i32, i32) {
    %c0_i32 = arith.constant 0 : i32
    %c0_i32_0 = arith.constant 0 : i32
    return %arg0, %c0_i32 : i32, i32
  }
  func.func @transform_2(%arg0: i32) -> (i32, i32) {
    %c0_i32 = arith.constant 0 : i32
    %c0_i32_0 = arith.constant 0 : i32
    %c0_i32_1 = arith.constant 0 : i32
    return %c0_i32, %c0_i32_0 : i32, i32
  }
  func.func @transform_3(%arg0: i32) -> (i32, i32) {
    %c0_i32 = arith.constant 0 : i32
    %c0_i32_0 = arith.constant 0 : i32
    %c0_i32_1 = arith.constant 0 : i32
    return %c0_i32, %c0_i32_0 : i32, i32
  }
  func.func @transform_4(%arg0: i32) -> (i32, i32) {
    %c0_i32 = arith.constant 0 : i32
    %c0_i32_0 = arith.constant 0 : i32
    %c0_i32_1 = arith.constant 0 : i32
    return %c0_i32, %c0_i32_0 : i32, i32
  }
  func.func @transform_5(%arg0: i32) -> (i32, i32) {
    %c0_i32 = arith.constant 0 : i32
    %c0_i32_0 = arith.constant 0 : i32
    %c0_i32_1 = arith.constant 0 : i32
    return %c0_i32, %c0_i32_0 : i32, i32
  }
  func.func @transform_6(%arg0: i32) -> (i32, i32) {
    %c0_i32 = arith.constant 0 : i32
    %c0_i32_0 = arith.constant 0 : i32
    %c0_i32_1 = arith.constant 0 : i32
    return %c0_i32, %c0_i32_0 : i32, i32
  }
  func.func @transform_7(%arg0: i32) -> (i32, i32) {
    %c0_i32 = arith.constant 0 : i32
    %c0_i32_0 = arith.constant 0 : i32
    %c0_i32_1 = arith.constant 0 : i32
    return %c0_i32, %c0_i32_0 : i32, i32
  }
  func.func @transform_8(%arg0: i32) -> (i32, i32) {
    %c0_i32 = arith.constant 0 : i32
    %c0_i32_0 = arith.constant 0 : i32
    %c0_i32_1 = arith.constant 0 : i32
    return %c0_i32, %c0_i32_0 : i32, i32
  }
  func.func @transform_9(%arg0: i32) -> (i32, i32) {
    %c0_i32 = arith.constant 0 : i32
    %c0_i32_0 = arith.constant 0 : i32
    %c0_i32_1 = arith.constant 0 : i32
    return %c0_i32, %c0_i32_0 : i32, i32
  }
  func.func @transform_10(%arg0: i32) -> (i32, i32) {
    %c0_i32 = arith.constant 0 : i32
    %c0_i32_0 = arith.constant 0 : i32
    %c0_i32_1 = arith.constant 0 : i32
    return %c0_i32, %c0_i32_0 : i32, i32
  }
  func.func @transform_11(%arg0: i32) -> (i32, i32) {
    %c0_i32 = arith.constant 0 : i32
    %c0_i32_0 = arith.constant 0 : i32
    %c0_i32_1 = arith.constant 0 : i32
    return %c0_i32, %c0_i32_0 : i32, i32
  }
  func.func @transform_12(%arg0: i32) -> (i32, i32) {
    %c0_i32 = arith.constant 0 : i32
    %c0_i32_0 = arith.constant 0 : i32
    %c0_i32_1 = arith.constant 0 : i32
    return %c0_i32, %c0_i32_0 : i32, i32
  }
  func.func @transform_13(%arg0: i32) -> (i32, i32) {
    %c0_i32 = arith.constant 0 : i32
    %c0_i32_0 = arith.constant 0 : i32
    %c0_i32_1 = arith.constant 0 : i32
    return %c0_i32, %c0_i32_0 : i32, i32
  }
  func.func @transform_14(%arg0: i32) -> (i32, i32) {
    %c0_i32 = arith.constant 0 : i32
    %c0_i32_0 = arith.constant 0 : i32
    %c0_i32_1 = arith.constant 0 : i32
    return %c0_i32, %c0_i32_0 : i32, i32
  }
  func.func @transform_15(%arg0: i32) -> (i32, i32) {
    %c0_i32 = arith.constant 0 : i32
    %c0_i32_0 = arith.constant 0 : i32
    %c0_i32_1 = arith.constant 0 : i32
    return %c0_i32, %c0_i32_0 : i32, i32
  }
  func.func @transform_16(%arg0: i32) -> (i32, i32) {
    %c0_i32 = arith.constant 0 : i32
    %c0_i32_0 = arith.constant 0 : i32
    %c0_i32_1 = arith.constant 0 : i32
    return %c0_i32, %c0_i32_0 : i32, i32
  }
  func.func @transform_17(%arg0: i32) -> (i32, i32) {
    %c0_i32 = arith.constant 0 : i32
    %c0_i32_0 = arith.constant 0 : i32
    %c0_i32_1 = arith.constant 0 : i32
    return %c0_i32, %c0_i32_0 : i32, i32
  }
  func.func @transform_18(%arg0: i32) -> (i32, i32) {
    %c0_i32 = arith.constant 0 : i32
    %c0_i32_0 = arith.constant 0 : i32
    return %arg0, %c0_i32 : i32, i32
  }
  func.func @transform_19(%arg0: i32) -> (i32, i32) {
    %c0_i32 = arith.constant 0 : i32
    %c0_i32_0 = arith.constant 0 : i32
    return %arg0, %c0_i32 : i32, i32
  }
}

</mosaic_0001>

<llo_original>
// kernel: conv_vae_forward.1
$region0: #{conv_vae_forward.1}
  #allocation0 [shape = 'u32[]', space=smem, size = 0x4, offset = 0x4, fixed_abs, tag = 'smem constant byte address 0x4 - core index']
  #allocation1 [shape = 'u32[144,128]{1,0:T(1,128)}', space=vmem, size = 0x12000, scoped, tag = 'internal scratch']
  %s0 = inlined_call_operand.vmem [shape: bf16[8,16], index: 0, kind: input, shape index: {}]
  %s1 = inlined_call_operand.vmem [shape: f32[8,8], index: 1, kind: input, shape index: {}]
  %s2 = inlined_call_operand.vmem [shape: bf16[16,256], index: 2, kind: input, shape index: {}]
  %s3 = inlined_call_operand.vmem [shape: f32[1,256], index: 3, kind: input, shape index: {}]
  %s4 = inlined_call_operand.vmem [shape: bf16[256,256], index: 4, kind: input, shape index: {}]
  %s5 = inlined_call_operand.vmem [shape: f32[1,256], index: 5, kind: input, shape index: {}]
  %s6 = inlined_call_operand.hbm [shape: bf16[256,256], index: 6, kind: input, shape index: {}]
  %s7 = inlined_call_operand.vmem [shape: f32[1,256], index: 7, kind: input, shape index: {}]
  %s8 = inlined_call_operand.vmem [shape: bf16[256,16], index: 8, kind: input, shape index: {}]
  %s9 = inlined_call_operand.vmem [shape: f32[1,16], index: 9, kind: input, shape index: {}]
  %s10 = inlined_call_operand.vmem [shape: bf16[8,256], index: 10, kind: input, shape index: {}]
  %s11 = inlined_call_operand.vmem [shape: f32[1,256], index: 11, kind: input, shape index: {}]
  %s12 = inlined_call_operand.hbm [shape: bf16[256,256], index: 12, kind: input, shape index: {}]
  %s13 = inlined_call_operand.vmem [shape: f32[1,256], index: 13, kind: input, shape index: {}]
  %s14 = inlined_call_operand.hbm [shape: bf16[256,256], index: 14, kind: input, shape index: {}]
  %s15 = inlined_call_operand.vmem [shape: f32[1,256], index: 15, kind: input, shape index: {}]
  %s16 = inlined_call_operand.vmem [shape: bf16[256,16], index: 16, kind: input, shape index: {}]
  %s17 = inlined_call_operand.vmem [shape: f32[1,16], index: 17, kind: input, shape index: {}]
  %s18 = inlined_call_operand.vmem [shape: f32[8,16], index: 18, kind: output, shape index: {0}]
  %s19 = inlined_call_operand.vmem [shape: f32[8,16], index: 19, kind: output, shape index: {1}]
  %20 = xla_tuple %s18, %s19
  %s21 = sld [smem:[#allocation0]]
  $region102: #{conv_vae_forward.1} parent=0
    _
  %s23 = ssub.s32 1, %s21
  %s24 = scalar_select 0, %s23, %s21
  $region1: #{conv_vae_forward.1} parent=0
    #allocation2 [shape = 'u8[131072]{0}', space=vmem, size = 0x20000, scoped, tag = 'input window, operand 6, single buffered']
    #allocation3 [shape = 's32[1]{0}', space=sflag, size = 0x4, scoped, tag = 'scoped memory for conv_vae_forward.1']
    #allocation4 [shape = 'u8[131072]{0}', space=vmem, size = 0x20000, scoped, tag = 'input window, operand 12, single buffered']
    #allocation5 [shape = 's32[1]{0}', space=sflag, size = 0x4, scoped, tag = 'scoped memory for conv_vae_forward.1']
    #allocation6 [shape = 'u8[131072]{0}', space=vmem, size = 0x20000, scoped, tag = 'input window, operand 14, single buffered']
    %25 = vsyncpa [#allocation3], 0
    %26 = vsyncpa [#allocation5], 0
    // Predicated region
    $region2: #{conv_vae_forward.1} parent=1 // pred_check
      _
    $region3: #{conv_vae_forward.1} parent=1 // pred_check_branch
      %28 = sbr.rel (0) target = $region5
    $region4: #{conv_vae_forward.1} parent=1 // pred_region
      _
    $region5: #{conv_vae_forward.1} parent=1 // pred_fallthru
      _
    // Predicated region
    $region6: #{conv_vae_forward.1} parent=1 // pred_check
      _
    $region7: #{conv_vae_forward.1} parent=1 // pred_check_branch
      %30 = sbr.rel (0) target = $region9
    $region8: #{conv_vae_forward.1} parent=1 // pred_region
      _
    $region9: #{conv_vae_forward.1} parent=1 // pred_fallthru
      _
    // Predicated region
    $region10: #{conv_vae_forward.1} parent=1 // pred_check
      _
    $region11: #{conv_vae_forward.1} parent=1 // pred_check_branch
      %32 = sbr.rel (0) target = $region13
    $region12: #{conv_vae_forward.1} parent=1 // pred_region
      _
    $region13: #{conv_vae_forward.1} parent=1 // pred_fallthru
      _
    // Predicated region
    $region14: #{conv_vae_forward.1} parent=1 // pred_check
      _
    $region15: #{conv_vae_forward.1} parent=1 // pred_check_branch
      %34 = sbr.rel (0) target = $region17
    $region16: #{conv_vae_forward.1} parent=1 // pred_region
      _
    $region17: #{conv_vae_forward.1} parent=1 // pred_fallthru
      _
    // Predicated region
    $region18: #{conv_vae_forward.1} parent=1 // pred_check
      _
    $region19: #{conv_vae_forward.1} parent=1 // pred_check_branch
      %36 = sbr.rel (0) target = $region21
    $region20: #{conv_vae_forward.1} parent=1 // pred_region
      _
    $region21: #{conv_vae_forward.1} parent=1 // pred_fallthru
      _
    // Predicated region
    $region22: #{conv_vae_forward.1} parent=1 // pred_check
      _
    $region23: #{conv_vae_forward.1} parent=1 // pred_check_branch
      %38 = sbr.rel (0) target = $region25
    $region24: #{conv_vae_forward.1} parent=1 // pred_region
      _
    $region25: #{conv_vae_forward.1} parent=1 // pred_fallthru
      _
    // Predicated region
    $region26: #{conv_vae_forward.1} parent=1 // pred_check
      _
    $region27: #{conv_vae_forward.1} parent=1 // pred_check_branch
      %40 = sbr.rel (0) target = $region29
    $region28: #{conv_vae_forward.1} parent=1 // pred_region
      %s42 = ssub.s32 4096, 4096
      %43 = vsyncadd [#allocation3], %s42
      %s44 = sshll.u32 [#allocation2], 4
      %s45 = int_to_ptr.vmem [resolvable:$true] %s44
      %50 = dma.hbm_to_vmem [thread:$0]  %s6, 4096, %s45, [#allocation3], 128, 128, 8
    $region29: #{conv_vae_forward.1} parent=1 // pred_fallthru
      _
    // Predicated region
    $region30: #{conv_vae_forward.1} parent=1 // pred_check
      _
    $region31: #{conv_vae_forward.1} parent=1 // pred_check_branch
      %52 = sbr.rel (0) target = $region33
    $region32: #{conv_vae_forward.1} parent=1 // pred_region
      _
    $region33: #{conv_vae_forward.1} parent=1 // pred_fallthru
      _
    // Predicated region
    $region34: #{conv_vae_forward.1} parent=1 // pred_check
      _
    $region35: #{conv_vae_forward.1} parent=1 // pred_check_branch
      %54 = sbr.rel (0) target = $region37
    $region36: #{conv_vae_forward.1} parent=1 // pred_region
      _
    $region37: #{conv_vae_forward.1} parent=1 // pred_fallthru
      _
    // Predicated region
    $region38: #{conv_vae_forward.1} parent=1 // pred_check
      _
    $region39: #{conv_vae_forward.1} parent=1 // pred_check_branch
      %56 = sbr.rel (0) target = $region41
    $region40: #{conv_vae_forward.1} parent=1 // pred_region
      _
    $region41: #{conv_vae_forward.1} parent=1 // pred_fallthru
      _
    // Predicated region
    $region42: #{conv_vae_forward.1} parent=1 // pred_check
      _
    $region43: #{conv_vae_forward.1} parent=1 // pred_check_branch
      %58 = sbr.rel (0) target = $region45
    $region44: #{conv_vae_forward.1} parent=1 // pred_region
      _
    $region45: #{conv_vae_forward.1} parent=1 // pred_fallthru
      _
    // Predicated region
    $region46: #{conv_vae_forward.1} parent=1 // pred_check
      _
    $region47: #{conv_vae_forward.1} parent=1 // pred_check_branch
      %60 = sbr.rel (0) target = $region49
    $region48: #{conv_vae_forward.1} parent=1 // pred_region
      _
    $region49: #{conv_vae_forward.1} parent=1 // pred_fallthru
      _
    // Predicated region
    $region50: #{conv_vae_forward.1} parent=1 // pred_check
      _
    $region51: #{conv_vae_forward.1} parent=1 // pred_check_branch
      %62 = sbr.rel (0) target = $region53
    $region52: #{conv_vae_forward.1} parent=1 // pred_region
      %s64 = ssub.s32 4096, 4096
      %65 = vsyncadd [#allocation5], %s64
      %s66 = sshll.u32 [#allocation4], 4
      %s67 = int_to_ptr.vmem [resolvable:$true] %s66
      %72 = dma.hbm_to_vmem [thread:$0]  %s12, 4096, %s67, [#allocation5], 128, 128, 8
    $region53: #{conv_vae_forward.1} parent=1 // pred_fallthru
      _
    // Predicated region
    $region54: #{conv_vae_forward.1} parent=1 // pred_check
      _
    $region55: #{conv_vae_forward.1} parent=1 // pred_check_branch
      %74 = sbr.rel (0) target = $region57
    $region56: #{conv_vae_forward.1} parent=1 // pred_region
      _
    $region57: #{conv_vae_forward.1} parent=1 // pred_fallthru
      _
    // Predicated region
    $region58: #{conv_vae_forward.1} parent=1 // pred_check
      _
    $region59: #{conv_vae_forward.1} parent=1 // pred_check_branch
      %76 = sbr.rel (0) target = $region61
    $region60: #{conv_vae_forward.1} parent=1 // pred_region
      %s78 = ssub.s32 4096, 4096
      %79 = vsyncadd [#allocation5], %s78
      %s80 = sshll.u32 [#allocation6], 4
      %s81 = int_to_ptr.vmem [resolvable:$true] %s80
      %86 = dma.hbm_to_vmem [thread:$0]  %s14, 4096, %s81, [#allocation5], 128, 128, 8
    $region61: #{conv_vae_forward.1} parent=1 // pred_fallthru
      _
    // Predicated region
    $region62: #{conv_vae_forward.1} parent=1 // pred_check
      _
    $region63: #{conv_vae_forward.1} parent=1 // pred_check_branch
      %88 = sbr.rel (0) target = $region65
    $region64: #{conv_vae_forward.1} parent=1 // pred_region
      _
    $region65: #{conv_vae_forward.1} parent=1 // pred_fallthru
      _
    // Predicated region
    $region66: #{conv_vae_forward.1} parent=1 // pred_check
      _
    $region67: #{conv_vae_forward.1} parent=1 // pred_check_branch
      %90 = sbr.rel (0) target = $region69
    $region68: #{conv_vae_forward.1} parent=1 // pred_region
      _
    $region69: #{conv_vae_forward.1} parent=1 // pred_fallthru
      _
    // Predicated region
    $region70: #{conv_vae_forward.1} parent=1 // pred_check
      _
    $region71: #{conv_vae_forward.1} parent=1 // pred_check_branch
      %92 = sbr.rel (0) target = $region73
    $region72: #{conv_vae_forward.1} parent=1 // pred_region
      _
    $region73: #{conv_vae_forward.1} parent=1 // pred_fallthru
      _
    // Predicated region
    $region74: #{conv_vae_forward.1} parent=1 // pred_check
      _
    $region75: #{conv_vae_forward.1} parent=1 // pred_check_branch
      %94 = sbr.rel (0) target = $region77
    $region76: #{conv_vae_forward.1} parent=1 // pred_region
      %95 = dma.done [#allocation3], 4096
    $region77: #{conv_vae_forward.1} parent=1 // pred_fallthru
      _
    // Predicated region
    $region78: #{conv_vae_forward.1} parent=1 // pred_check
      _
    $region79: #{conv_vae_forward.1} parent=1 // pred_check_branch
      %97 = sbr.rel (0) target = $region81
    $region80: #{conv_vae_forward.1} parent=1 // pred_region
      %98 = dma.done [#allocation5], 4096
    $region81: #{conv_vae_forward.1} parent=1 // pred_fallthru
      _
    // Predicated region
    $region82: #{conv_vae_forward.1} parent=1 // pred_check
      _
    $region83: #{conv_vae_forward.1} parent=1 // pred_check_branch
      %100 = sbr.rel (0) target = $region85
    $region84: #{conv_vae_forward.1} parent=1 // pred_region
      %101 = dma.done [#allocation5], 4096
    $region85: #{conv_vae_forward.1} parent=1 // pred_fallthru
      _
    %v103 = vld [vmem:[%s0] sm:$0xf]
    %v104 = vld [vmem:[%s2] sm:$0xff]
    %v105 = vld [vmem:[%s2 + $0x8] sm:$0xff]
    %v106 = vld [vmem:[%s3] sm:$0x3]
    %v108 = vlaneseq
    %v109 = vshrl.u32 %v108, 7
    %v110 = vsub.s32 0, %v109
    %v111 = vrot.slane %v106, %v110
    %v112 = vlaneseq
    %v113 = vshrl.u32 %v112, 7
    %v114 = vsub.s32 1, %v113
    %v115 = vrot.slane %v106, %v114
    %v120 = vunpack.c.l.b16 %v104
    %v121 = vunpack.c.h.b16 %v104
    %v122 = vunpack.c.l.b16 %v105
    %v123 = vunpack.c.h.b16 %v105
    %v124 = vpack.c.b16 %v122, %v120
    %v125 = vpack.c.b16 %v123, %v121
    %vm128 = vcmask 130048
    %v130 = vsel %vm128, %v103, 0
    %132 = vmatprep.subr.bf16.mxu0 %v125
    %133 = vmatpush1.bf16.msra.mxu0 %v124
    %134 = vmatprep.subr.bf16.mxu0 0
    %135 = vmatpush1.bf16.msra.mxu0 0
    %136 = vmatprep.subr.bf16.mxu0 0
    %137 = vmatpush1.bf16.msra.mxu0 0
    %138 = vmatprep.subr.bf16.mxu0 0
    %139 = vmatpush1.bf16.msra.mxu0 0
    %140 = vmatprep.subr.bf16.mxu0 0
    %141 = vmatpush1.bf16.msra.mxu0 0
    %142 = vmatprep.subr.bf16.mxu0 0
    %143 = vmatpush1.bf16.msra.mxu0 0
    %144 = vmatprep.subr.bf16.mxu0 0
    %145 = vmatpush1.bf16.msra.mxu0 0
    %146 = vmatprep.subr.bf16.mxu0 0
    %147 = vmatpush1.bf16.msra.mxu0 0
    %148 = vmatprep.subr.bf16.mxu0 0
    %149 = vmatpush1.bf16.msra.mxu0 0
    %150 = vmatprep.subr.bf16.mxu0 0
    %151 = vmatpush1.bf16.msra.mxu0 0
    %152 = vmatprep.subr.bf16.mxu0 0
    %153 = vmatpush1.bf16.msra.mxu0 0
    %154 = vmatprep.subr.bf16.mxu0 0
    %155 = vmatpush1.bf16.msra.mxu0 0
    %156 = vmatprep.subr.bf16.mxu0 0
    %157 = vmatpush1.bf16.msra.mxu0 0
    %158 = vmatprep.subr.bf16.mxu0 0
    %159 = vmatpush1.bf16.msra.mxu0 0
    %160 = vmatprep.subr.bf16.mxu0 0
    %161 = vmatpush1.bf16.msra.mxu0 0
    %162 = vmatprep.subr.bf16.mxu0 0
    %163 = vmatpush1.bf16.msra.mxu0 0
    %164 = vmatprep.mubr.bf16.mxu0 0
    %165 = vmatmul.mubr.bf16.gmra.mrb[0].mxu0 %v130
    %v166 = vpop.f32.mrb[0].mxu0
    %v167 = vadd.f32 %v111, %v166
    %v168 = vpop.f32.mrb[0].mxu0
    %v169 = vadd.f32 %v115, %v168
    %v170 = vpop.f32.mrb[0].mxu0
    %v171 = vpop.f32.mrb[0].mxu0
    %172 = vdwg.mxu0
    %v173 = vmax.f32 %v167, 0.0
    %v174 = vmax.f32 %v169, 0.0
    %v175 = vld [vmem:[%s4] sm:$0xff]
    %v176 = vld [vmem:[%s4 + $0x8] sm:$0xff]
    %v177 = vld [vmem:[%s4 + $0x10] sm:$0xff]
    %v178 = vld [vmem:[%s4 + $0x18] sm:$0xff]
    %v179 = vld [vmem:[%s4 + $0x20] sm:$0xff]
    %v180 = vld [vmem:[%s4 + $0x28] sm:$0xff]
    %v181 = vld [vmem:[%s4 + $0x30] sm:$0xff]
    %v182 = vld [vmem:[%s4 + $0x38] sm:$0xff]
    %v183 = vld [vmem:[%s4 + $0x40] sm:$0xff]
    %v184 = vld [vmem:[%s4 + $0x48] sm:$0xff]
    %v185 = vld [vmem:[%s4 + $0x50] sm:$0xff]
    %v186 = vld [vmem:[%s4 + $0x58] sm:$0xff]
    %v187 = vld [vmem:[%s4 + $0x60] sm:$0xff]
    %v188 = vld [vmem:[%s4 + $0x68] sm:$0xff]
    %v189 = vld [vmem:[%s4 + $0x70] sm:$0xff]
    %v190 = vld [vmem:[%s4 + $0x78] sm:$0xff]
    %v191 = vld [vmem:[%s4 + $0x80] sm:$0xff]
    %v192 = vld [vmem:[%s4 + $0x88] sm:$0xff]
    %v193 = vld [vmem:[%s4 + $0x90] sm:$0xff]
    %v194 = vld [vmem:[%s4 + $0x98] sm:$0xff]
    %v195 = vld [vmem:[%s4 + $0xa0] sm:$0xff]
    %v196 = vld [vmem:[%s4 + $0xa8] sm:$0xff]
    %v197 = vld [vmem:[%s4 + $0xb0] sm:$0xff]
    %v198 = vld [vmem:[%s4 + $0xb8] sm:$0xff]
    %v199 = vld [vmem:[%s4 + $0xc0] sm:$0xff]
    %v200 = vld [vmem:[%s4 + $0xc8] sm:$0xff]
    %v201 = vld [vmem:[%s4 + $0xd0] sm:$0xff]
    %v202 = vld [vmem:[%s4 + $0xd8] sm:$0xff]
    %v203 = vld [vmem:[%s4 + $0xe0] sm:$0xff]
    %v204 = vld [vmem:[%s4 + $0xe8] sm:$0xff]
    %v205 = vld [vmem:[%s4 + $0xf0] sm:$0xff]
    %v206 = vld [vmem:[%s4 + $0xf8] sm:$0xff]
    %v207 = vpack.c.bf16 %v173, %v173
    %v208 = vpack.c.bf16 %v174, %v174
    %v209 = vld [vmem:[%s5] sm:$0x3]
    %v211 = vlaneseq
    %v212 = vshrl.u32 %v211, 7
    %v213 = vsub.s32 0, %v212
    %v214 = vrot.slane %v209, %v213
    %v215 = vlaneseq
    %v216 = vshrl.u32 %v215, 7
    %v217 = vsub.s32 1, %v216
    %v218 = vrot.slane %v209, %v217
    %v253 = vunpack.c.l.b16 %v175
    %v254 = vunpack.c.h.b16 %v175
    %v255 = vunpack.c.l.b16 %v176
    %v256 = vunpack.c.h.b16 %v176
    %v257 = vunpack.c.l.b16 %v177
    %v258 = vunpack.c.h.b16 %v177
    %v259 = vunpack.c.l.b16 %v178
    %v260 = vunpack.c.h.b16 %v178
    %v261 = vunpack.c.l.b16 %v179
    %v262 = vunpack.c.h.b16 %v179
    %v263 = vunpack.c.l.b16 %v180
    %v264 = vunpack.c.h.b16 %v180
    %v265 = vunpack.c.l.b16 %v181
    %v266 = vunpack.c.h.b16 %v181
    %v267 = vunpack.c.l.b16 %v182
    %v268 = vunpack.c.h.b16 %v182
    %v269 = vunpack.c.l.b16 %v183
    %v270 = vunpack.c.h.b16 %v183
    %v271 = vunpack.c.l.b16 %v184
    %v272 = vunpack.c.h.b16 %v184
    %v273 = vunpack.c.l.b16 %v185
    %v274 = vunpack.c.h.b16 %v185
    %v275 = vunpack.c.l.b16 %v186
    %v276 = vunpack.c.h.b16 %v186
    %v277 = vunpack.c.l.b16 %v187
    %v278 = vunpack.c.h.b16 %v187
    %v279 = vunpack.c.l.b16 %v188
    %v280 = vunpack.c.h.b16 %v188
    %v281 = vunpack.c.l.b16 %v189
    %v282 = vunpack.c.h.b16 %v189
    %v283 = vunpack.c.l.b16 %v190
    %v284 = vunpack.c.h.b16 %v190
    %v285 = vunpack.c.l.b16 %v191
    %v286 = vunpack.c.h.b16 %v191
    %v287 = vunpack.c.l.b16 %v192
    %v288 = vunpack.c.h.b16 %v192
    %v289 = vunpack.c.l.b16 %v193
    %v290 = vunpack.c.h.b16 %v193
    %v291 = vunpack.c.l.b16 %v194
    %v292 = vunpack.c.h.b16 %v194
    %v293 = vunpack.c.l.b16 %v195
    %v294 = vunpack.c.h.b16 %v195
    %v295 = vunpack.c.l.b16 %v196
    %v296 = vunpack.c.h.b16 %v196
    %v297 = vunpack.c.l.b16 %v197
    %v298 = vunpack.c.h.b16 %v197
    %v299 = vunpack.c.l.b16 %v198
    %v300 = vunpack.c.h.b16 %v198
    %v301 = vunpack.c.l.b16 %v199
    %v302 = vunpack.c.h.b16 %v199
    %v303 = vunpack.c.l.b16 %v200
    %v304 = vunpack.c.h.b16 %v200
    %v305 = vunpack.c.l.b16 %v201
    %v306 = vunpack.c.h.b16 %v201
    %v307 = vunpack.c.l.b16 %v202
    %v308 = vunpack.c.h.b16 %v202
    %v309 = vunpack.c.l.b16 %v203
    %v310 = vunpack.c.h.b16 %v203
    %v311 = vunpack.c.l.b16 %v204
    %v312 = vunpack.c.h.b16 %v204
    %v313 = vunpack.c.l.b16 %v205
    %v314 = vunpack.c.h.b16 %v205
    %v315 = vunpack.c.l.b16 %v206
    %v316 = vunpack.c.h.b16 %v206
    %v317 = vpack.c.b16 %v255, %v253
    %v318 = vpack.c.b16 %v256, %v254
    %v319 = vpack.c.b16 %v259, %v257
    %v320 = vpack.c.b16 %v260, %v258
    %v321 = vpack.c.b16 %v263, %v261
    %v322 = vpack.c.b16 %v264, %v262
    %v323 = vpack.c.b16 %v267, %v265
    %v324 = vpack.c.b16 %v268, %v266
    %v325 = vpack.c.b16 %v271, %v269
    %v326 = vpack.c.b16 %v272, %v270
    %v327 = vpack.c.b16 %v275, %v273
    %v328 = vpack.c.b16 %v276, %v274
    %v329 = vpack.c.b16 %v279, %v277
    %v330 = vpack.c.b16 %v280, %v278
    %v331 = vpack.c.b16 %v283, %v281
    %v332 = vpack.c.b16 %v284, %v282
    %v333 = vpack.c.b16 %v287, %v285
    %v334 = vpack.c.b16 %v288, %v286
    %v335 = vpack.c.b16 %v291, %v289
    %v336 = vpack.c.b16 %v292, %v290
    %v337 = vpack.c.b16 %v295, %v293
    %v338 = vpack.c.b16 %v296, %v294
    %v339 = vpack.c.b16 %v299, %v297
    %v340 = vpack.c.b16 %v300, %v298
    %v341 = vpack.c.b16 %v303, %v301
    %v342 = vpack.c.b16 %v304, %v302
    %v343 = vpack.c.b16 %v307, %v305
    %v344 = vpack.c.b16 %v308, %v306
    %v345 = vpack.c.b16 %v311, %v309
    %v346 = vpack.c.b16 %v312, %v310
    %v347 = vpack.c.b16 %v315, %v313
    %v348 = vpack.c.b16 %v316, %v314
    %381 = vmatprep.subr.bf16.mxu0 %v318
    %382 = vmatpush1.bf16.msra.mxu0 %v317
    %383 = vmatprep.subr.bf16.mxu0 %v320
    %384 = vmatpush1.bf16.msra.mxu0 %v319
    %385 = vmatprep.subr.bf16.mxu0 %v322
    %386 = vmatpush1.bf16.msra.mxu0 %v321
    %387 = vmatprep.subr.bf16.mxu0 %v324
    %388 = vmatpush1.bf16.msra.mxu0 %v323
    %389 = vmatprep.subr.bf16.mxu0 %v326
    %390 = vmatpush1.bf16.msra.mxu0 %v325
    %391 = vmatprep.subr.bf16.mxu0 %v328
    %392 = vmatpush1.bf16.msra.mxu0 %v327
    %393 = vmatprep.subr.bf16.mxu0 %v330
    %394 = vmatpush1.bf16.msra.mxu0 %v329
    %395 = vmatprep.subr.bf16.mxu0 %v332
    %396 = vmatpush1.bf16.msra.mxu0 %v331
    %397 = vmatprep.subr.bf16.mxu0 %v334
    %398 = vmatpush1.bf16.msra.mxu0 %v333
    %399 = vmatprep.subr.bf16.mxu0 %v336
    %400 = vmatpush1.bf16.msra.mxu0 %v335
    %401 = vmatprep.subr.bf16.mxu0 %v338
    %402 = vmatpush1.bf16.msra.mxu0 %v337
    %403 = vmatprep.subr.bf16.mxu0 %v340
    %404 = vmatpush1.bf16.msra.mxu0 %v339
    %405 = vmatprep.subr.bf16.mxu0 %v342
    %406 = vmatpush1.bf16.msra.mxu0 %v341
    %407 = vmatprep.subr.bf16.mxu0 %v344
    %408 = vmatpush1.bf16.msra.mxu0 %v343
    %409 = vmatprep.subr.bf16.mxu0 %v346
    %410 = vmatpush1.bf16.msra.mxu0 %v345
    %411 = vmatprep.subr.bf16.mxu0 %v348
    %412 = vmatpush1.bf16.msra.mxu0 %v347
    %413 = vmatprep.mubr.bf16.mxu0 %v208
    %414 = vmatmul.mubr.bf16.gmra.mrb[0].mxu0 %v207
    %v415 = vpop.f32.mrb[0].mxu0
    %v416 = vadd.f32 %v214, %v415
    %v417 = vpop.f32.mrb[0].mxu0
    %v418 = vadd.f32 %v218, %v417
    %v419 = vpop.f32.mrb[0].mxu0
    %v420 = vpop.f32.mrb[0].mxu0
    %421 = vdwg.mxu0
    %v422 = vmax.f32 %v416, 0.0
    %v423 = vmax.f32 %v418, 0.0
    %v424 = vld [vmem:[#allocation2] sm:$0xff]
    %v425 = vld [vmem:[#allocation2 + $0x8] sm:$0xff]
    %v426 = vld [vmem:[#allocation2 + $0x10] sm:$0xff]
    %v427 = vld [vmem:[#allocation2 + $0x18] sm:$0xff]
    %v428 = vld [vmem:[#allocation2 + $0x20] sm:$0xff]
    %v429 = vld [vmem:[#allocation2 + $0x28] sm:$0xff]
    %v430 = vld [vmem:[#allocation2 + $0x30] sm:$0xff]
    %v431 = vld [vmem:[#allocation2 + $0x38] sm:$0xff]
    %v432 = vld [vmem:[#allocation2 + $0x40] sm:$0xff]
    %v433 = vld [vmem:[#allocation2 + $0x48] sm:$0xff]
    %v434 = vld [vmem:[#allocation2 + $0x50] sm:$0xff]
    %v435 = vld [vmem:[#allocation2 + $0x58] sm:$0xff]
    %v436 = vld [vmem:[#allocation2 + $0x60] sm:$0xff]
    %v437 = vld [vmem:[#allocation2 + $0x68] sm:$0xff]
    %v438 = vld [vmem:[#allocation2 + $0x70] sm:$0xff]
    %v439 = vld [vmem:[#allocation2 + $0x78] sm:$0xff]
    %v440 = vld [vmem:[#allocation2 + $0x80] sm:$0xff]
    %v441 = vld [vmem:[#allocation2 + $0x88] sm:$0xff]
    %v442 = vld [vmem:[#allocation2 + $0x90] sm:$0xff]
    %v443 = vld [vmem:[#allocation2 + $0x98] sm:$0xff]
    %v444 = vld [vmem:[#allocation2 + $0xa0] sm:$0xff]
    %v445 = vld [vmem:[#allocation2 + $0xa8] sm:$0xff]
    %v446 = vld [vmem:[#allocation2 + $0xb0] sm:$0xff]
    %v447 = vld [vmem:[#allocation2 + $0xb8] sm:$0xff]
    %v448 = vld [vmem:[#allocation2 + $0xc0] sm:$0xff]
    %v449 = vld [vmem:[#allocation2 + $0xc8] sm:$0xff]
    %v450 = vld [vmem:[#allocation2 + $0xd0] sm:$0xff]
    %v451 = vld [vmem:[#allocation2 + $0xd8] sm:$0xff]
    %v452 = vld [vmem:[#allocation2 + $0xe0] sm:$0xff]
    %v453 = vld [vmem:[#allocation2 + $0xe8] sm:$0xff]
    %v454 = vld [vmem:[#allocation2 + $0xf0] sm:$0xff]
    %v455 = vld [vmem:[#allocation2 + $0xf8] sm:$0xff]
    %v456 = vpack.c.bf16 %v422, %v422
    %v457 = vpack.c.bf16 %v423, %v423
    %v458 = vld [vmem:[%s7] sm:$0x3]
    %v460 = vlaneseq
    %v461 = vshrl.u32 %v460, 7
    %v462 = vsub.s32 0, %v461
    %v463 = vrot.slane %v458, %v462
    %v464 = vlaneseq
    %v465 = vshrl.u32 %v464, 7
    %v466 = vsub.s32 1, %v465
    %v467 = vrot.slane %v458, %v466
    %v502 = vunpack.c.l.b16 %v424
    %v503 = vunpack.c.h.b16 %v424
    %v504 = vunpack.c.l.b16 %v425
    %v505 = vunpack.c.h.b16 %v425
    %v506 = vunpack.c.l.b16 %v426
    %v507 = vunpack.c.h.b16 %v426
    %v508 = vunpack.c.l.b16 %v427
    %v509 = vunpack.c.h.b16 %v427
    %v510 = vunpack.c.l.b16 %v428
    %v511 = vunpack.c.h.b16 %v428
    %v512 = vunpack.c.l.b16 %v429
    %v513 = vunpack.c.h.b16 %v429
    %v514 = vunpack.c.l.b16 %v430
    %v515 = vunpack.c.h.b16 %v430
    %v516 = vunpack.c.l.b16 %v431
    %v517 = vunpack.c.h.b16 %v431
    %v518 = vunpack.c.l.b16 %v432
    %v519 = vunpack.c.h.b16 %v432
    %v520 = vunpack.c.l.b16 %v433
    %v521 = vunpack.c.h.b16 %v433
    %v522 = vunpack.c.l.b16 %v434
    %v523 = vunpack.c.h.b16 %v434
    %v524 = vunpack.c.l.b16 %v435
    %v525 = vunpack.c.h.b16 %v435
    %v526 = vunpack.c.l.b16 %v436
    %v527 = vunpack.c.h.b16 %v436
    %v528 = vunpack.c.l.b16 %v437
    %v529 = vunpack.c.h.b16 %v437
    %v530 = vunpack.c.l.b16 %v438
    %v531 = vunpack.c.h.b16 %v438
    %v532 = vunpack.c.l.b16 %v439
    %v533 = vunpack.c.h.b16 %v439
    %v534 = vunpack.c.l.b16 %v440
    %v535 = vunpack.c.h.b16 %v440
    %v536 = vunpack.c.l.b16 %v441
    %v537 = vunpack.c.h.b16 %v441
    %v538 = vunpack.c.l.b16 %v442
    %v539 = vunpack.c.h.b16 %v442
    %v540 = vunpack.c.l.b16 %v443
    %v541 = vunpack.c.h.b16 %v443
    %v542 = vunpack.c.l.b16 %v444
    %v543 = vunpack.c.h.b16 %v444
    %v544 = vunpack.c.l.b16 %v445
    %v545 = vunpack.c.h.b16 %v445
    %v546 = vunpack.c.l.b16 %v446
    %v547 = vunpack.c.h.b16 %v446
    %v548 = vunpack.c.l.b16 %v447
    %v549 = vunpack.c.h.b16 %v447
    %v550 = vunpack.c.l.b16 %v448
    %v551 = vunpack.c.h.b16 %v448
    %v552 = vunpack.c.l.b16 %v449
    %v553 = vunpack.c.h.b16 %v449
    %v554 = vunpack.c.l.b16 %v450
    %v555 = vunpack.c.h.b16 %v450
    %v556 = vunpack.c.l.b16 %v451
    %v557 = vunpack.c.h.b16 %v451
    %v558 = vunpack.c.l.b16 %v452
    %v559 = vunpack.c.h.b16 %v452
    %v560 = vunpack.c.l.b16 %v453
    %v561 = vunpack.c.h.b16 %v453
    %v562 = vunpack.c.l.b16 %v454
    %v563 = vunpack.c.h.b16 %v454
    %v564 = vunpack.c.l.b16 %v455
    %v565 = vunpack.c.h.b16 %v455
    %v566 = vpack.c.b16 %v504, %v502
    %v567 = vpack.c.b16 %v505, %v503
    %v568 = vpack.c.b16 %v508, %v506
    %v569 = vpack.c.b16 %v509, %v507
    %v570 = vpack.c.b16 %v512, %v510
    %v571 = vpack.c.b16 %v513, %v511
    %v572 = vpack.c.b16 %v516, %v514
    %v573 = vpack.c.b16 %v517, %v515
    %v574 = vpack.c.b16 %v520, %v518
    %v575 = vpack.c.b16 %v521, %v519
    %v576 = vpack.c.b16 %v524, %v522
    %v577 = vpack.c.b16 %v525, %v523
    %v578 = vpack.c.b16 %v528, %v526
    %v579 = vpack.c.b16 %v529, %v527
    %v580 = vpack.c.b16 %v532, %v530
    %v581 = vpack.c.b16 %v533, %v531
    %v582 = vpack.c.b16 %v536, %v534
    %v583 = vpack.c.b16 %v537, %v535
    %v584 = vpack.c.b16 %v540, %v538
    %v585 = vpack.c.b16 %v541, %v539
    %v586 = vpack.c.b16 %v544, %v542
    %v587 = vpack.c.b16 %v545, %v543
    %v588 = vpack.c.b16 %v548, %v546
    %v589 = vpack.c.b16 %v549, %v547
    %v590 = vpack.c.b16 %v552, %v550
    %v591 = vpack.c.b16 %v553, %v551
    %v592 = vpack.c.b16 %v556, %v554
    %v593 = vpack.c.b16 %v557, %v555
    %v594 = vpack.c.b16 %v560, %v558
    %v595 = vpack.c.b16 %v561, %v559
    %v596 = vpack.c.b16 %v564, %v562
    %v597 = vpack.c.b16 %v565, %v563
    %630 = vmatprep.subr.bf16.mxu0 %v567
    %631 = vmatpush1.bf16.msra.mxu0 %v566
    %632 = vmatprep.subr.bf16.mxu0 %v569
    %633 = vmatpush1.bf16.msra.mxu0 %v568
    %634 = vmatprep.subr.bf16.mxu0 %v571
    %635 = vmatpush1.bf16.msra.mxu0 %v570
    %636 = vmatprep.subr.bf16.mxu0 %v573
    %637 = vmatpush1.bf16.msra.mxu0 %v572
    %638 = vmatprep.subr.bf16.mxu0 %v575
    %639 = vmatpush1.bf16.msra.mxu0 %v574
    %640 = vmatprep.subr.bf16.mxu0 %v577
    %641 = vmatpush1.bf16.msra.mxu0 %v576
    %642 = vmatprep.subr.bf16.mxu0 %v579
    %643 = vmatpush1.bf16.msra.mxu0 %v578
    %644 = vmatprep.subr.bf16.mxu0 %v581
    %645 = vmatpush1.bf16.msra.mxu0 %v580
    %646 = vmatprep.subr.bf16.mxu0 %v583
    %647 = vmatpush1.bf16.msra.mxu0 %v582
    %648 = vmatprep.subr.bf16.mxu0 %v585
    %649 = vmatpush1.bf16.msra.mxu0 %v584
    %650 = vmatprep.subr.bf16.mxu0 %v587
    %651 = vmatpush1.bf16.msra.mxu0 %v586
    %652 = vmatprep.subr.bf16.mxu0 %v589
    %653 = vmatpush1.bf16.msra.mxu0 %v588
    %654 = vmatprep.subr.bf16.mxu0 %v591
    %655 = vmatpush1.bf16.msra.mxu0 %v590
    %656 = vmatprep.subr.bf16.mxu0 %v593
    %657 = vmatpush1.bf16.msra.mxu0 %v592
    %658 = vmatprep.subr.bf16.mxu0 %v595
    %659 = vmatpush1.bf16.msra.mxu0 %v594
    %660 = vmatprep.subr.bf16.mxu0 %v597
    %661 = vmatpush1.bf16.msra.mxu0 %v596
    %662 = vmatprep.mubr.bf16.mxu0 %v457
    %663 = vmatmul.mubr.bf16.gmra.mrb[0].mxu0 %v456
    %v664 = vpop.f32.mrb[0].mxu0
    %v665 = vadd.f32 %v463, %v664
    %v666 = vpop.f32.mrb[0].mxu0
    %v667 = vadd.f32 %v467, %v666
    %v668 = vpop.f32.mrb[0].mxu0
    %v669 = vpop.f32.mrb[0].mxu0
    %670 = vdwg.mxu0
    %v671 = vmax.f32 %v665, 0.0
    %v672 = vmax.f32 %v667, 0.0
    %v673 = vld [vmem:[%s8] sm:$0xf]
    %v674 = vld [vmem:[%s8 + $0x4] sm:$0xf]
    %v675 = vld [vmem:[%s8 + $0x8] sm:$0xf]
    %v676 = vld [vmem:[%s8 + $0xc] sm:$0xf]
    %v677 = vld [vmem:[%s8 + $0x10] sm:$0xf]
    %v678 = vld [vmem:[%s8 + $0x14] sm:$0xf]
    %v679 = vld [vmem:[%s8 + $0x18] sm:$0xf]
    %v680 = vld [vmem:[%s8 + $0x1c] sm:$0xf]
    %v681 = vld [vmem:[%s8 + $0x20] sm:$0xf]
    %v682 = vld [vmem:[%s8 + $0x24] sm:$0xf]
    %v683 = vld [vmem:[%s8 + $0x28] sm:$0xf]
    %v684 = vld [vmem:[%s8 + $0x2c] sm:$0xf]
    %v685 = vld [vmem:[%s8 + $0x30] sm:$0xf]
    %v686 = vld [vmem:[%s8 + $0x34] sm:$0xf]
    %v687 = vld [vmem:[%s8 + $0x38] sm:$0xf]
    %v688 = vld [vmem:[%s8 + $0x3c] sm:$0xf]
    %v689 = vld [vmem:[%s8 + $0x40] sm:$0xf]
    %v690 = vld [vmem:[%s8 + $0x44] sm:$0xf]
    %v691 = vld [vmem:[%s8 + $0x48] sm:$0xf]
    %v692 = vld [vmem:[%s8 + $0x4c] sm:$0xf]
    %v693 = vld [vmem:[%s8 + $0x50] sm:$0xf]
    %v694 = vld [vmem:[%s8 + $0x54] sm:$0xf]
    %v695 = vld [vmem:[%s8 + $0x58] sm:$0xf]
    %v696 = vld [vmem:[%s8 + $0x5c] sm:$0xf]
    %v697 = vld [vmem:[%s8 + $0x60] sm:$0xf]
    %v698 = vld [vmem:[%s8 + $0x64] sm:$0xf]
    %v699 = vld [vmem:[%s8 + $0x68] sm:$0xf]
    %v700 = vld [vmem:[%s8 + $0x6c] sm:$0xf]
    %v701 = vld [vmem:[%s8 + $0x70] sm:$0xf]
    %v702 = vld [vmem:[%s8 + $0x74] sm:$0xf]
    %v703 = vld [vmem:[%s8 + $0x78] sm:$0xf]
    %v704 = vld [vmem:[%s8 + $0x7c] sm:$0xf]
    %v705 = vpack.c.bf16 %v671, %v671
    %v706 = vpack.c.bf16 %v672, %v672
    %v707 = vld [vmem:[%s9] sm:$0x1]
    %v709 = vlaneseq
    %v710 = vshrl.u32 %v709, 7
    %v711 = vsub.s32 0, %v710
    %v712 = vrot.slane %v707, %v711
    %v746 = vunpack.c.l.b16 %v673
    %v747 = vunpack.c.l.b16 %v674
    %v748 = vunpack.c.l.b16 %v675
    %v749 = vunpack.c.l.b16 %v676
    %v750 = vunpack.c.l.b16 %v677
    %v751 = vunpack.c.l.b16 %v678
    %v752 = vunpack.c.l.b16 %v679
    %v753 = vunpack.c.l.b16 %v680
    %v754 = vunpack.c.l.b16 %v681
    %v755 = vunpack.c.l.b16 %v682
    %v756 = vunpack.c.l.b16 %v683
    %v757 = vunpack.c.l.b16 %v684
    %v758 = vunpack.c.l.b16 %v685
    %v759 = vunpack.c.l.b16 %v686
    %v760 = vunpack.c.l.b16 %v687
    %v761 = vunpack.c.l.b16 %v688
    %v762 = vunpack.c.l.b16 %v689
    %v763 = vunpack.c.l.b16 %v690
    %v764 = vunpack.c.l.b16 %v691
    %v765 = vunpack.c.l.b16 %v692
    %v766 = vunpack.c.l.b16 %v693
    %v767 = vunpack.c.l.b16 %v694
    %v768 = vunpack.c.l.b16 %v695
    %v769 = vunpack.c.l.b16 %v696
    %v770 = vunpack.c.l.b16 %v697
    %v771 = vunpack.c.l.b16 %v698
    %v772 = vunpack.c.l.b16 %v699
    %v773 = vunpack.c.l.b16 %v700
    %v774 = vunpack.c.l.b16 %v701
    %v775 = vunpack.c.l.b16 %v702
    %v776 = vunpack.c.l.b16 %v703
    %v777 = vunpack.c.l.b16 %v704
    %v778 = vpack.c.b16 %v747, %v746
    %v779 = vpack.c.b16 %v749, %v748
    %v780 = vpack.c.b16 %v751, %v750
    %v781 = vpack.c.b16 %v753, %v752
    %v782 = vpack.c.b16 %v755, %v754
    %v783 = vpack.c.b16 %v757, %v756
    %v784 = vpack.c.b16 %v759, %v758
    %v785 = vpack.c.b16 %v761, %v760
    %v786 = vpack.c.b16 %v763, %v762
    %v787 = vpack.c.b16 %v765, %v764
    %v788 = vpack.c.b16 %v767, %v766
    %v789 = vpack.c.b16 %v769, %v768
    %v790 = vpack.c.b16 %v771, %v770
    %v791 = vpack.c.b16 %v773, %v772
    %v792 = vpack.c.b16 %v775, %v774
    %v793 = vpack.c.b16 %v777, %v776
    %810 = vmatprep.subr.bf16.mxu0 0
    %811 = vmatpush1.bf16.msra.mxu0 %v778
    %812 = vmatprep.subr.bf16.mxu0 0
    %813 = vmatpush1.bf16.msra.mxu0 %v779
    %814 = vmatprep.subr.bf16.mxu0 0
    %815 = vmatpush1.bf16.msra.mxu0 %v780
    %816 = vmatprep.subr.bf16.mxu0 0
    %817 = vmatpush1.bf16.msra.mxu0 %v781
    %818 = vmatprep.subr.bf16.mxu0 0
    %819 = vmatpush1.bf16.msra.mxu0 %v782
    %820 = vmatprep.subr.bf16.mxu0 0
    %821 = vmatpush1.bf16.msra.mxu0 %v783
    %822 = vmatprep.subr.bf16.mxu0 0
    %823 = vmatpush1.bf16.msra.mxu0 %v784
    %824 = vmatprep.subr.bf16.mxu0 0
    %825 = vmatpush1.bf16.msra.mxu0 %v785
    %826 = vmatprep.subr.bf16.mxu0 0
    %827 = vmatpush1.bf16.msra.mxu0 %v786
    %828 = vmatprep.subr.bf16.mxu0 0
    %829 = vmatpush1.bf16.msra.mxu0 %v787
    %830 = vmatprep.subr.bf16.mxu0 0
    %831 = vmatpush1.bf16.msra.mxu0 %v788
    %832 = vmatprep.subr.bf16.mxu0 0
    %833 = vmatpush1.bf16.msra.mxu0 %v789
    %834 = vmatprep.subr.bf16.mxu0 0
    %835 = vmatpush1.bf16.msra.mxu0 %v790
    %836 = vmatprep.subr.bf16.mxu0 0
    %837 = vmatpush1.bf16.msra.mxu0 %v791
    %838 = vmatprep.subr.bf16.mxu0 0
    %839 = vmatpush1.bf16.msra.mxu0 %v792
    %840 = vmatprep.subr.bf16.mxu0 0
    %841 = vmatpush1.bf16.msra.mxu0 %v793
    %842 = vmatprep.mubr.bf16.mxu0 %v706
    %843 = vmatmul.mubr.bf16.gmra.mrb[0].mxu0 %v705
    %v844 = vpop.f32.mrb[0].mxu0
    %v845 = vadd.f32 %v712, %v844
    %v846 = vpop.f32.mrb[0].mxu0
    %v847 = vpop.f32.mrb[0].mxu0
    %v848 = vpop.f32.mrb[0].mxu0
    %849 = vdwg.mxu0
    %850 = vst.msk [vmem:[%s19] sm:$0xff] %vm128, %v845
    %v851 = vld [vmem:[%s1] sm:$0xff]
    %v852 = vmul.f32 %v845, 0.5
    %v853 = vmul.f32 %v852, 1.442695
    %v854 = vpow.pop %v853
    %856 = vrot.lane.b32.xlu0 %v854, 120
    %v857 = vpop.permute.xlu0 %856
    %v859 = vmul.f32 %v851, %v857
    %v860 = vadd.f32 %v845, %v859
    %v861 = vld [vmem:[%s10] sm:$0xff]
    %v862 = vpack.c.bf16 %v860, %v860
    %v863 = vld [vmem:[%s11] sm:$0x3]
    %v865 = vlaneseq
    %v866 = vshrl.u32 %v865, 7
    %v867 = vsub.s32 0, %v866
    %v868 = vrot.slane %v863, %v867
    %v869 = vlaneseq
    %v870 = vshrl.u32 %v869, 7
    %v871 = vsub.s32 1, %v870
    %v872 = vrot.slane %v863, %v871
    %v876 = vunpack.c.l.b16 %v861
    %v877 = vunpack.c.h.b16 %v861
    %v878 = vpack.c.b16 %v876, %v876
    %v879 = vpack.c.b16 %v877, %v877
    %vm880 = vcmask 64512
    %v882 = vsel %vm880, %v862, 0
    %vm884 = vcmask 1043456
    %v886 = vsel %vm884, %v878, 0
    %v889 = vsel %vm884, %v879, 0
    %891 = vmatprep.subr.bf16.mxu0 %v889
    %892 = vmatpush1.bf16.msra.mxu0 %v886
    %893 = vmatprep.subr.bf16.mxu0 0
    %894 = vmatpush1.bf16.msra.mxu0 0
    %895 = vmatprep.subr.bf16.mxu0 0
    %896 = vmatpush1.bf16.msra.mxu0 0
    %897 = vmatprep.subr.bf16.mxu0 0
    %898 = vmatpush1.bf16.msra.mxu0 0
    %899 = vmatprep.subr.bf16.mxu0 0
    %900 = vmatpush1.bf16.msra.mxu0 0
    %901 = vmatprep.subr.bf16.mxu0 0
    %902 = vmatpush1.bf16.msra.mxu0 0
    %903 = vmatprep.subr.bf16.mxu0 0
    %904 = vmatpush1.bf16.msra.mxu0 0
    %905 = vmatprep.subr.bf16.mxu0 0
    %906 = vmatpush1.bf16.msra.mxu0 0
    %907 = vmatprep.subr.bf16.mxu0 0
    %908 = vmatpush1.bf16.msra.mxu0 0
    %909 = vmatprep.subr.bf16.mxu0 0
    %910 = vmatpush1.bf16.msra.mxu0 0
    %911 = vmatprep.subr.bf16.mxu0 0
    %912 = vmatpush1.bf16.msra.mxu0 0
    %913 = vmatprep.subr.bf16.mxu0 0
    %914 = vmatpush1.bf16.msra.mxu0 0
    %915 = vmatprep.subr.bf16.mxu0 0
    %916 = vmatpush1.bf16.msra.mxu0 0
    %917 = vmatprep.subr.bf16.mxu0 0
    %918 = vmatpush1.bf16.msra.mxu0 0
    %919 = vmatprep.subr.bf16.mxu0 0
    %920 = vmatpush1.bf16.msra.mxu0 0
    %921 = vmatprep.subr.bf16.mxu0 0
    %922 = vmatpush1.bf16.msra.mxu0 0
    %923 = vmatprep.mubr.bf16.mxu0 0
    %924 = vmatmul.mubr.bf16.gmra.mrb[0].mxu0 %v882
    %v925 = vpop.f32.mrb[0].mxu0
    %v926 = vadd.f32 %v868, %v925
    %v927 = vpop.f32.mrb[0].mxu0
    %v928 = vadd.f32 %v872, %v927
    %v929 = vpop.f32.mrb[0].mxu0
    %v930 = vpop.f32.mrb[0].mxu0
    %931 = vdwg.mxu0
    %v932 = vmax.f32 %v926, 0.0
    %v933 = vmax.f32 %v928, 0.0
    %v934 = vld [vmem:[#allocation4] sm:$0xff]
    %v935 = vld [vmem:[#allocation4 + $0x8] sm:$0xff]
    %v936 = vld [vmem:[#allocation4 + $0x10] sm:$0xff]
    %v937 = vld [vmem:[#allocation4 + $0x18] sm:$0xff]
    %v938 = vld [vmem:[#allocation4 + $0x20] sm:$0xff]
    %v939 = vld [vmem:[#allocation4 + $0x28] sm:$0xff]
    %v940 = vld [vmem:[#allocation4 + $0x30] sm:$0xff]
    %v941 = vld [vmem:[#allocation4 + $0x38] sm:$0xff]
    %v942 = vld [vmem:[#allocation4 + $0x40] sm:$0xff]
    %v943 = vld [vmem:[#allocation4 + $0x48] sm:$0xff]
    %v944 = vld [vmem:[#allocation4 + $0x50] sm:$0xff]
    %v945 = vld [vmem:[#allocation4 + $0x58] sm:$0xff]
    %v946 = vld [vmem:[#allocation4 + $0x60] sm:$0xff]
    %v947 = vld [vmem:[#allocation4 + $0x68] sm:$0xff]
    %v948 = vld [vmem:[#allocation4 + $0x70] sm:$0xff]
    %v949 = vld [vmem:[#allocation4 + $0x78] sm:$0xff]
    %v950 = vld [vmem:[#allocation4 + $0x80] sm:$0xff]
    %v951 = vld [vmem:[#allocation4 + $0x88] sm:$0xff]
    %v952 = vld [vmem:[#allocation4 + $0x90] sm:$0xff]
    %v953 = vld [vmem:[#allocation4 + $0x98] sm:$0xff]
    %v954 = vld [vmem:[#allocation4 + $0xa0] sm:$0xff]
    %v955 = vld [vmem:[#allocation4 + $0xa8] sm:$0xff]
    %v956 = vld [vmem:[#allocation4 + $0xb0] sm:$0xff]
    %v957 = vld [vmem:[#allocation4 + $0xb8] sm:$0xff]
    %v958 = vld [vmem:[#allocation4 + $0xc0] sm:$0xff]
    %v959 = vld [vmem:[#allocation4 + $0xc8] sm:$0xff]
    %v960 = vld [vmem:[#allocation4 + $0xd0] sm:$0xff]
    %v961 = vld [vmem:[#allocation4 + $0xd8] sm:$0xff]
    %v962 = vld [vmem:[#allocation4 + $0xe0] sm:$0xff]
    %v963 = vld [vmem:[#allocation4 + $0xe8] sm:$0xff]
    %v964 = vld [vmem:[#allocation4 + $0xf0] sm:$0xff]
    %v965 = vld [vmem:[#allocation4 + $0xf8] sm:$0xff]
    %v966 = vpack.c.bf16 %v932, %v932
    %v967 = vpack.c.bf16 %v933, %v933
    %v968 = vld [vmem:[%s13] sm:$0x3]
    %v970 = vlaneseq
    %v971 = vshrl.u32 %v970, 7
    %v972 = vsub.s32 0, %v971
    %v973 = vrot.slane %v968, %v972
    %v974 = vlaneseq
    %v975 = vshrl.u32 %v974, 7
    %v976 = vsub.s32 1, %v975
    %v977 = vrot.slane %v968, %v976
    %v1012 = vunpack.c.l.b16 %v934
    %v1013 = vunpack.c.h.b16 %v934
    %v1014 = vunpack.c.l.b16 %v935
    %v1015 = vunpack.c.h.b16 %v935
    %v1016 = vunpack.c.l.b16 %v936
    %v1017 = vunpack.c.h.b16 %v936
    %v1018 = vunpack.c.l.b16 %v937
    %v1019 = vunpack.c.h.b16 %v937
    %v1020 = vunpack.c.l.b16 %v938
    %v1021 = vunpack.c.h.b16 %v938
    %v1022 = vunpack.c.l.b16 %v939
    %v1023 = vunpack.c.h.b16 %v939
    %v1024 = vunpack.c.l.b16 %v940
    %v1025 = vunpack.c.h.b16 %v940
    %v1026 = vunpack.c.l.b16 %v941
    %v1027 = vunpack.c.h.b16 %v941
    %v1028 = vunpack.c.l.b16 %v942
    %v1029 = vunpack.c.h.b16 %v942
    %v1030 = vunpack.c.l.b16 %v943
    %v1031 = vunpack.c.h.b16 %v943
    %v1032 = vunpack.c.l.b16 %v944
    %v1033 = vunpack.c.h.b16 %v944
    %v1034 = vunpack.c.l.b16 %v945
    %v1035 = vunpack.c.h.b16 %v945
    %v1036 = vunpack.c.l.b16 %v946
    %v1037 = vunpack.c.h.b16 %v946
    %v1038 = vunpack.c.l.b16 %v947
    %v1039 = vunpack.c.h.b16 %v947
    %v1040 = vunpack.c.l.b16 %v948
    %v1041 = vunpack.c.h.b16 %v948
    %v1042 = vunpack.c.l.b16 %v949
    %v1043 = vunpack.c.h.b16 %v949
    %v1044 = vunpack.c.l.b16 %v950
    %v1045 = vunpack.c.h.b16 %v950
    %v1046 = vunpack.c.l.b16 %v951
    %v1047 = vunpack.c.h.b16 %v951
    %v1048 = vunpack.c.l.b16 %v952
    %v1049 = vunpack.c.h.b16 %v952
    %v1050 = vunpack.c.l.b16 %v953
    %v1051 = vunpack.c.h.b16 %v953
    %v1052 = vunpack.c.l.b16 %v954
    %v1053 = vunpack.c.h.b16 %v954
    %v1054 = vunpack.c.l.b16 %v955
    %v1055 = vunpack.c.h.b16 %v955
    %v1056 = vunpack.c.l.b16 %v956
    %v1057 = vunpack.c.h.b16 %v956
    %v1058 = vunpack.c.l.b16 %v957
    %v1059 = vunpack.c.h.b16 %v957
    %v1060 = vunpack.c.l.b16 %v958
    %v1061 = vunpack.c.h.b16 %v958
    %v1062 = vunpack.c.l.b16 %v959
    %v1063 = vunpack.c.h.b16 %v959
    %v1064 = vunpack.c.l.b16 %v960
    %v1065 = vunpack.c.h.b16 %v960
    %v1066 = vunpack.c.l.b16 %v961
    %v1067 = vunpack.c.h.b16 %v961
    %v1068 = vunpack.c.l.b16 %v962
    %v1069 = vunpack.c.h.b16 %v962
    %v1070 = vunpack.c.l.b16 %v963
    %v1071 = vunpack.c.h.b16 %v963
    %v1072 = vunpack.c.l.b16 %v964
    %v1073 = vunpack.c.h.b16 %v964
    %v1074 = vunpack.c.l.b16 %v965
    %v1075 = vunpack.c.h.b16 %v965
    %v1076 = vpack.c.b16 %v1014, %v1012
    %v1077 = vpack.c.b16 %v1015, %v1013
    %v1078 = vpack.c.b16 %v1018, %v1016
    %v1079 = vpack.c.b16 %v1019, %v1017
    %v1080 = vpack.c.b16 %v1022, %v1020
    %v1081 = vpack.c.b16 %v1023, %v1021
    %v1082 = vpack.c.b16 %v1026, %v1024
    %v1083 = vpack.c.b16 %v1027, %v1025
    %v1084 = vpack.c.b16 %v1030, %v1028
    %v1085 = vpack.c.b16 %v1031, %v1029
    %v1086 = vpack.c.b16 %v1034, %v1032
    %v1087 = vpack.c.b16 %v1035, %v1033
    %v1088 = vpack.c.b16 %v1038, %v1036
    %v1089 = vpack.c.b16 %v1039, %v1037
    %v1090 = vpack.c.b16 %v1042, %v1040
    %v1091 = vpack.c.b16 %v1043, %v1041
    %v1092 = vpack.c.b16 %v1046, %v1044
    %v1093 = vpack.c.b16 %v1047, %v1045
    %v1094 = vpack.c.b16 %v1050, %v1048
    %v1095 = vpack.c.b16 %v1051, %v1049
    %v1096 = vpack.c.b16 %v1054, %v1052
    %v1097 = vpack.c.b16 %v1055, %v1053
    %v1098 = vpack.c.b16 %v1058, %v1056
    %v1099 = vpack.c.b16 %v1059, %v1057
    %v1100 = vpack.c.b16 %v1062, %v1060
    %v1101 = vpack.c.b16 %v1063, %v1061
    %v1102 = vpack.c.b16 %v1066, %v1064
    %v1103 = vpack.c.b16 %v1067, %v1065
    %v1104 = vpack.c.b16 %v1070, %v1068
    %v1105 = vpack.c.b16 %v1071, %v1069
    %v1106 = vpack.c.b16 %v1074, %v1072
    %v1107 = vpack.c.b16 %v1075, %v1073
    %1140 = vmatprep.subr.bf16.mxu0 %v1077
    %1141 = vmatpush1.bf16.msra.mxu0 %v1076
    %1142 = vmatprep.subr.bf16.mxu0 %v1079
    %1143 = vmatpush1.bf16.msra.mxu0 %v1078
    %1144 = vmatprep.subr.bf16.mxu0 %v1081
    %1145 = vmatpush1.bf16.msra.mxu0 %v1080
    %1146 = vmatprep.subr.bf16.mxu0 %v1083
    %1147 = vmatpush1.bf16.msra.mxu0 %v1082
    %1148 = vmatprep.subr.bf16.mxu0 %v1085
    %1149 = vmatpush1.bf16.msra.mxu0 %v1084
    %1150 = vmatprep.subr.bf16.mxu0 %v1087
    %1151 = vmatpush1.bf16.msra.mxu0 %v1086
    %1152 = vmatprep.subr.bf16.mxu0 %v1089
    %1153 = vmatpush1.bf16.msra.mxu0 %v1088
    %1154 = vmatprep.subr.bf16.mxu0 %v1091
    %1155 = vmatpush1.bf16.msra.mxu0 %v1090
    %1156 = vmatprep.subr.bf16.mxu0 %v1093
    %1157 = vmatpush1.bf16.msra.mxu0 %v1092
    %1158 = vmatprep.subr.bf16.mxu0 %v1095
    %1159 = vmatpush1.bf16.msra.mxu0 %v1094
    %1160 = vmatprep.subr.bf16.mxu0 %v1097
    %1161 = vmatpush1.bf16.msra.mxu0 %v1096
    %1162 = vmatprep.subr.bf16.mxu0 %v1099
    %1163 = vmatpush1.bf16.msra.mxu0 %v1098
    %1164 = vmatprep.subr.bf16.mxu0 %v1101
    %1165 = vmatpush1.bf16.msra.mxu0 %v1100
    %1166 = vmatprep.subr.bf16.mxu0 %v1103
    %1167 = vmatpush1.bf16.msra.mxu0 %v1102
    %1168 = vmatprep.subr.bf16.mxu0 %v1105
    %1169 = vmatpush1.bf16.msra.mxu0 %v1104
    %1170 = vmatprep.subr.bf16.mxu0 %v1107
    %1171 = vmatpush1.bf16.msra.mxu0 %v1106
    %1172 = vmatprep.mubr.bf16.mxu0 %v967
    %1173 = vmatmul.mubr.bf16.gmra.mrb[0].mxu0 %v966
    %v1174 = vpop.f32.mrb[0].mxu0
    %v1175 = vadd.f32 %v973, %v1174
    %v1176 = vpop.f32.mrb[0].mxu0
    %v1177 = vadd.f32 %v977, %v1176
    %v1178 = vpop.f32.mrb[0].mxu0
    %v1179 = vpop.f32.mrb[0].mxu0
    %1180 = vdwg.mxu0
    %v1181 = vmax.f32 %v1175, 0.0
    %v1182 = vmax.f32 %v1177, 0.0
    %v1183 = vld [vmem:[#allocation6] sm:$0xff]
    %v1184 = vld [vmem:[#allocation6 + $0x8] sm:$0xff]
    %v1185 = vld [vmem:[#allocation6 + $0x10] sm:$0xff]
    %v1186 = vld [vmem:[#allocation6 + $0x18] sm:$0xff]
    %v1187 = vld [vmem:[#allocation6 + $0x20] sm:$0xff]
    %v1188 = vld [vmem:[#allocation6 + $0x28] sm:$0xff]
    %v1189 = vld [vmem:[#allocation6 + $0x30] sm:$0xff]
    %v1190 = vld [vmem:[#allocation6 + $0x38] sm:$0xff]
    %v1191 = vld [vmem:[#allocation6 + $0x40] sm:$0xff]
    %v1192 = vld [vmem:[#allocation6 + $0x48] sm:$0xff]
    %v1193 = vld [vmem:[#allocation6 + $0x50] sm:$0xff]
    %v1194 = vld [vmem:[#allocation6 + $0x58] sm:$0xff]
    %v1195 = vld [vmem:[#allocation6 + $0x60] sm:$0xff]
    %v1196 = vld [vmem:[#allocation6 + $0x68] sm:$0xff]
    %v1197 = vld [vmem:[#allocation6 + $0x70] sm:$0xff]
    %v1198 = vld [vmem:[#allocation6 + $0x78] sm:$0xff]
    %v1199 = vld [vmem:[#allocation6 + $0x80] sm:$0xff]
    %v1200 = vld [vmem:[#allocation6 + $0x88] sm:$0xff]
    %v1201 = vld [vmem:[#allocation6 + $0x90] sm:$0xff]
    %v1202 = vld [vmem:[#allocation6 + $0x98] sm:$0xff]
    %v1203 = vld [vmem:[#allocation6 + $0xa0] sm:$0xff]
    %v1204 = vld [vmem:[#allocation6 + $0xa8] sm:$0xff]
    %v1205 = vld [vmem:[#allocation6 + $0xb0] sm:$0xff]
    %v1206 = vld [vmem:[#allocation6 + $0xb8] sm:$0xff]
    %v1207 = vld [vmem:[#allocation6 + $0xc0] sm:$0xff]
    %v1208 = vld [vmem:[#allocation6 + $0xc8] sm:$0xff]
    %v1209 = vld [vmem:[#allocation6 + $0xd0] sm:$0xff]
    %v1210 = vld [vmem:[#allocation6 + $0xd8] sm:$0xff]
    %v1211 = vld [vmem:[#allocation6 + $0xe0] sm:$0xff]
    %v1212 = vld [vmem:[#allocation6 + $0xe8] sm:$0xff]
    %v1213 = vld [vmem:[#allocation6 + $0xf0] sm:$0xff]
    %v1214 = vld [vmem:[#allocation6 + $0xf8] sm:$0xff]
    %v1215 = vpack.c.bf16 %v1181, %v1181
    %v1216 = vpack.c.bf16 %v1182, %v1182
    %v1217 = vld [vmem:[%s15] sm:$0x3]
    %v1219 = vlaneseq
    %v1220 = vshrl.u32 %v1219, 7
    %v1221 = vsub.s32 0, %v1220
    %v1222 = vrot.slane %v1217, %v1221
    %v1223 = vlaneseq
    %v1224 = vshrl.u32 %v1223, 7
    %v1225 = vsub.s32 1, %v1224
    %v1226 = vrot.slane %v1217, %v1225
    %v1261 = vunpack.c.l.b16 %v1183
    %v1262 = vunpack.c.h.b16 %v1183
    %v1263 = vunpack.c.l.b16 %v1184
    %v1264 = vunpack.c.h.b16 %v1184
    %v1265 = vunpack.c.l.b16 %v1185
    %v1266 = vunpack.c.h.b16 %v1185
    %v1267 = vunpack.c.l.b16 %v1186
    %v1268 = vunpack.c.h.b16 %v1186
    %v1269 = vunpack.c.l.b16 %v1187
    %v1270 = vunpack.c.h.b16 %v1187
    %v1271 = vunpack.c.l.b16 %v1188
    %v1272 = vunpack.c.h.b16 %v1188
    %v1273 = vunpack.c.l.b16 %v1189
    %v1274 = vunpack.c.h.b16 %v1189
    %v1275 = vunpack.c.l.b16 %v1190
    %v1276 = vunpack.c.h.b16 %v1190
    %v1277 = vunpack.c.l.b16 %v1191
    %v1278 = vunpack.c.h.b16 %v1191
    %v1279 = vunpack.c.l.b16 %v1192
    %v1280 = vunpack.c.h.b16 %v1192
    %v1281 = vunpack.c.l.b16 %v1193
    %v1282 = vunpack.c.h.b16 %v1193
    %v1283 = vunpack.c.l.b16 %v1194
    %v1284 = vunpack.c.h.b16 %v1194
    %v1285 = vunpack.c.l.b16 %v1195
    %v1286 = vunpack.c.h.b16 %v1195
    %v1287 = vunpack.c.l.b16 %v1196
    %v1288 = vunpack.c.h.b16 %v1196
    %v1289 = vunpack.c.l.b16 %v1197
    %v1290 = vunpack.c.h.b16 %v1197
    %v1291 = vunpack.c.l.b16 %v1198
    %v1292 = vunpack.c.h.b16 %v1198
    %v1293 = vunpack.c.l.b16 %v1199
    %v1294 = vunpack.c.h.b16 %v1199
    %v1295 = vunpack.c.l.b16 %v1200
    %v1296 = vunpack.c.h.b16 %v1200
    %v1297 = vunpack.c.l.b16 %v1201
    %v1298 = vunpack.c.h.b16 %v1201
    %v1299 = vunpack.c.l.b16 %v1202
    %v1300 = vunpack.c.h.b16 %v1202
    %v1301 = vunpack.c.l.b16 %v1203
    %v1302 = vunpack.c.h.b16 %v1203
    %v1303 = vunpack.c.l.b16 %v1204
    %v1304 = vunpack.c.h.b16 %v1204
    %v1305 = vunpack.c.l.b16 %v1205
    %v1306 = vunpack.c.h.b16 %v1205
    %v1307 = vunpack.c.l.b16 %v1206
    %v1308 = vunpack.c.h.b16 %v1206
    %v1309 = vunpack.c.l.b16 %v1207
    %v1310 = vunpack.c.h.b16 %v1207
    %v1311 = vunpack.c.l.b16 %v1208
    %v1312 = vunpack.c.h.b16 %v1208
    %v1313 = vunpack.c.l.b16 %v1209
    %v1314 = vunpack.c.h.b16 %v1209
    %v1315 = vunpack.c.l.b16 %v1210
    %v1316 = vunpack.c.h.b16 %v1210
    %v1317 = vunpack.c.l.b16 %v1211
    %v1318 = vunpack.c.h.b16 %v1211
    %v1319 = vunpack.c.l.b16 %v1212
    %v1320 = vunpack.c.h.b16 %v1212
    %v1321 = vunpack.c.l.b16 %v1213
    %v1322 = vunpack.c.h.b16 %v1213
    %v1323 = vunpack.c.l.b16 %v1214
    %v1324 = vunpack.c.h.b16 %v1214
    %v1325 = vpack.c.b16 %v1263, %v1261
    %v1326 = vpack.c.b16 %v1264, %v1262
    %v1327 = vpack.c.b16 %v1267, %v1265
    %v1328 = vpack.c.b16 %v1268, %v1266
    %v1329 = vpack.c.b16 %v1271, %v1269
    %v1330 = vpack.c.b16 %v1272, %v1270
    %v1331 = vpack.c.b16 %v1275, %v1273
    %v1332 = vpack.c.b16 %v1276, %v1274
    %v1333 = vpack.c.b16 %v1279, %v1277
    %v1334 = vpack.c.b16 %v1280, %v1278
    %v1335 = vpack.c.b16 %v1283, %v1281
    %v1336 = vpack.c.b16 %v1284, %v1282
    %v1337 = vpack.c.b16 %v1287, %v1285
    %v1338 = vpack.c.b16 %v1288, %v1286
    %v1339 = vpack.c.b16 %v1291, %v1289
    %v1340 = vpack.c.b16 %v1292, %v1290
    %v1341 = vpack.c.b16 %v1295, %v1293
    %v1342 = vpack.c.b16 %v1296, %v1294
    %v1343 = vpack.c.b16 %v1299, %v1297
    %v1344 = vpack.c.b16 %v1300, %v1298
    %v1345 = vpack.c.b16 %v1303, %v1301
    %v1346 = vpack.c.b16 %v1304, %v1302
    %v1347 = vpack.c.b16 %v1307, %v1305
    %v1348 = vpack.c.b16 %v1308, %v1306
    %v1349 = vpack.c.b16 %v1311, %v1309
    %v1350 = vpack.c.b16 %v1312, %v1310
    %v1351 = vpack.c.b16 %v1315, %v1313
    %v1352 = vpack.c.b16 %v1316, %v1314
    %v1353 = vpack.c.b16 %v1319, %v1317
    %v1354 = vpack.c.b16 %v1320, %v1318
    %v1355 = vpack.c.b16 %v1323, %v1321
    %v1356 = vpack.c.b16 %v1324, %v1322
    %1389 = vmatprep.subr.bf16.mxu0 %v1326
    %1390 = vmatpush1.bf16.msra.mxu0 %v1325
    %1391 = vmatprep.subr.bf16.mxu0 %v1328
    %1392 = vmatpush1.bf16.msra.mxu0 %v1327
    %1393 = vmatprep.subr.bf16.mxu0 %v1330
    %1394 = vmatpush1.bf16.msra.mxu0 %v1329
    %1395 = vmatprep.subr.bf16.mxu0 %v1332
    %1396 = vmatpush1.bf16.msra.mxu0 %v1331
    %1397 = vmatprep.subr.bf16.mxu0 %v1334
    %1398 = vmatpush1.bf16.msra.mxu0 %v1333
    %1399 = vmatprep.subr.bf16.mxu0 %v1336
    %1400 = vmatpush1.bf16.msra.mxu0 %v1335
    %1401 = vmatprep.subr.bf16.mxu0 %v1338
    %1402 = vmatpush1.bf16.msra.mxu0 %v1337
    %1403 = vmatprep.subr.bf16.mxu0 %v1340
    %1404 = vmatpush1.bf16.msra.mxu0 %v1339
    %1405 = vmatprep.subr.bf16.mxu0 %v1342
    %1406 = vmatpush1.bf16.msra.mxu0 %v1341
    %1407 = vmatprep.subr.bf16.mxu0 %v1344
    %1408 = vmatpush1.bf16.msra.mxu0 %v1343
    %1409 = vmatprep.subr.bf16.mxu0 %v1346
    %1410 = vmatpush1.bf16.msra.mxu0 %v1345
    %1411 = vmatprep.subr.bf16.mxu0 %v1348
    %1412 = vmatpush1.bf16.msra.mxu0 %v1347
    %1413 = vmatprep.subr.bf16.mxu0 %v1350
    %1414 = vmatpush1.bf16.msra.mxu0 %v1349
    %1415 = vmatprep.subr.bf16.mxu0 %v1352
    %1416 = vmatpush1.bf16.msra.mxu0 %v1351
    %1417 = vmatprep.subr.bf16.mxu0 %v1354
    %1418 = vmatpush1.bf16.msra.mxu0 %v1353
    %1419 = vmatprep.subr.bf16.mxu0 %v1356
    %1420 = vmatpush1.bf16.msra.mxu0 %v1355
    %1421 = vmatprep.mubr.bf16.mxu0 %v1216
    %1422 = vmatmul.mubr.bf16.gmra.mrb[0].mxu0 %v1215
    %v1423 = vpop.f32.mrb[0].mxu0
    %v1424 = vadd.f32 %v1222, %v1423
    %v1425 = vpop.f32.mrb[0].mxu0
    %v1426 = vadd.f32 %v1226, %v1425
    %v1427 = vpop.f32.mrb[0].mxu0
    %v1428 = vpop.f32.mrb[0].mxu0
    %1429 = vdwg.mxu0
    %v1430 = vmax.f32 %v1424, 0.0
    %v1431 = vmax.f32 %v1426, 0.0
    %v1432 = vld [vmem:[%s16] sm:$0xf]
    %v1433 = vld [vmem:[%s16 + $0x4] sm:$0xf]
    %v1434 = vld [vmem:[%s16 + $0x8] sm:$0xf]
    %v1435 = vld [vmem:[%s16 + $0xc] sm:$0xf]
    %v1436 = vld [vmem:[%s16 + $0x10] sm:$0xf]
    %v1437 = vld [vmem:[%s16 + $0x14] sm:$0xf]
    %v1438 = vld [vmem:[%s16 + $0x18] sm:$0xf]
    %v1439 = vld [vmem:[%s16 + $0x1c] sm:$0xf]
    %v1440 = vld [vmem:[%s16 + $0x20] sm:$0xf]
    %v1441 = vld [vmem:[%s16 + $0x24] sm:$0xf]
    %v1442 = vld [vmem:[%s16 + $0x28] sm:$0xf]
    %v1443 = vld [vmem:[%s16 + $0x2c] sm:$0xf]
    %v1444 = vld [vmem:[%s16 + $0x30] sm:$0xf]
    %v1445 = vld [vmem:[%s16 + $0x34] sm:$0xf]
    %v1446 = vld [vmem:[%s16 + $0x38] sm:$0xf]
    %v1447 = vld [vmem:[%s16 + $0x3c] sm:$0xf]
    %v1448 = vld [vmem:[%s16 + $0x40] sm:$0xf]
    %v1449 = vld [vmem:[%s16 + $0x44] sm:$0xf]
    %v1450 = vld [vmem:[%s16 + $0x48] sm:$0xf]
    %v1451 = vld [vmem:[%s16 + $0x4c] sm:$0xf]
    %v1452 = vld [vmem:[%s16 + $0x50] sm:$0xf]
    %v1453 = vld [vmem:[%s16 + $0x54] sm:$0xf]
    %v1454 = vld [vmem:[%s16 + $0x58] sm:$0xf]
    %v1455 = vld [vmem:[%s16 + $0x5c] sm:$0xf]
    %v1456 = vld [vmem:[%s16 + $0x60] sm:$0xf]
    %v1457 = vld [vmem:[%s16 + $0x64] sm:$0xf]
    %v1458 = vld [vmem:[%s16 + $0x68] sm:$0xf]
    %v1459 = vld [vmem:[%s16 + $0x6c] sm:$0xf]
    %v1460 = vld [vmem:[%s16 + $0x70] sm:$0xf]
    %v1461 = vld [vmem:[%s16 + $0x74] sm:$0xf]
    %v1462 = vld [vmem:[%s16 + $0x78] sm:$0xf]
    %v1463 = vld [vmem:[%s16 + $0x7c] sm:$0xf]
    %v1464 = vpack.c.bf16 %v1430, %v1430
    %v1465 = vpack.c.bf16 %v1431, %v1431
    %v1466 = vld [vmem:[%s17] sm:$0x1]
    %v1468 = vlaneseq
    %v1469 = vshrl.u32 %v1468, 7
    %v1470 = vsub.s32 0, %v1469
    %v1471 = vrot.slane %v1466, %v1470
    %v1505 = vunpack.c.l.b16 %v1432
    %v1506 = vunpack.c.l.b16 %v1433
    %v1507 = vunpack.c.l.b16 %v1434
    %v1508 = vunpack.c.l.b16 %v1435
    %v1509 = vunpack.c.l.b16 %v1436
    %v1510 = vunpack.c.l.b16 %v1437
    %v1511 = vunpack.c.l.b16 %v1438
    %v1512 = vunpack.c.l.b16 %v1439
    %v1513 = vunpack.c.l.b16 %v1440
    %v1514 = vunpack.c.l.b16 %v1441
    %v1515 = vunpack.c.l.b16 %v1442
    %v1516 = vunpack.c.l.b16 %v1443
    %v1517 = vunpack.c.l.b16 %v1444
    %v1518 = vunpack.c.l.b16 %v1445
    %v1519 = vunpack.c.l.b16 %v1446
    %v1520 = vunpack.c.l.b16 %v1447
    %v1521 = vunpack.c.l.b16 %v1448
    %v1522 = vunpack.c.l.b16 %v1449
    %v1523 = vunpack.c.l.b16 %v1450
    %v1524 = vunpack.c.l.b16 %v1451
    %v1525 = vunpack.c.l.b16 %v1452
    %v1526 = vunpack.c.l.b16 %v1453
    %v1527 = vunpack.c.l.b16 %v1454
    %v1528 = vunpack.c.l.b16 %v1455
    %v1529 = vunpack.c.l.b16 %v1456
    %v1530 = vunpack.c.l.b16 %v1457
    %v1531 = vunpack.c.l.b16 %v1458
    %v1532 = vunpack.c.l.b16 %v1459
    %v1533 = vunpack.c.l.b16 %v1460
    %v1534 = vunpack.c.l.b16 %v1461
    %v1535 = vunpack.c.l.b16 %v1462
    %v1536 = vunpack.c.l.b16 %v1463
    %v1537 = vpack.c.b16 %v1506, %v1505
    %v1538 = vpack.c.b16 %v1508, %v1507
    %v1539 = vpack.c.b16 %v1510, %v1509
    %v1540 = vpack.c.b16 %v1512, %v1511
    %v1541 = vpack.c.b16 %v1514, %v1513
    %v1542 = vpack.c.b16 %v1516, %v1515
    %v1543 = vpack.c.b16 %v1518, %v1517
    %v1544 = vpack.c.b16 %v1520, %v1519
    %v1545 = vpack.c.b16 %v1522, %v1521
    %v1546 = vpack.c.b16 %v1524, %v1523
    %v1547 = vpack.c.b16 %v1526, %v1525
    %v1548 = vpack.c.b16 %v1528, %v1527
    %v1549 = vpack.c.b16 %v1530, %v1529
    %v1550 = vpack.c.b16 %v1532, %v1531
    %v1551 = vpack.c.b16 %v1534, %v1533
    %v1552 = vpack.c.b16 %v1536, %v1535
    %1569 = vmatprep.subr.bf16.mxu0 0
    %1570 = vmatpush1.bf16.msra.mxu0 %v1537
    %1571 = vmatprep.subr.bf16.mxu0 0
    %1572 = vmatpush1.bf16.msra.mxu0 %v1538
    %1573 = vmatprep.subr.bf16.mxu0 0
    %1574 = vmatpush1.bf16.msra.mxu0 %v1539
    %1575 = vmatprep.subr.bf16.mxu0 0
    %1576 = vmatpush1.bf16.msra.mxu0 %v1540
    %1577 = vmatprep.subr.bf16.mxu0 0
    %1578 = vmatpush1.bf16.msra.mxu0 %v1541
    %1579 = vmatprep.subr.bf16.mxu0 0
    %1580 = vmatpush1.bf16.msra.mxu0 %v1542
    %1581 = vmatprep.subr.bf16.mxu0 0
    %1582 = vmatpush1.bf16.msra.mxu0 %v1543
    %1583 = vmatprep.subr.bf16.mxu0 0
    %1584 = vmatpush1.bf16.msra.mxu0 %v1544
    %1585 = vmatprep.subr.bf16.mxu0 0
    %1586 = vmatpush1.bf16.msra.mxu0 %v1545
    %1587 = vmatprep.subr.bf16.mxu0 0
    %1588 = vmatpush1.bf16.msra.mxu0 %v1546
    %1589 = vmatprep.subr.bf16.mxu0 0
    %1590 = vmatpush1.bf16.msra.mxu0 %v1547
    %1591 = vmatprep.subr.bf16.mxu0 0
    %1592 = vmatpush1.bf16.msra.mxu0 %v1548
    %1593 = vmatprep.subr.bf16.mxu0 0
    %1594 = vmatpush1.bf16.msra.mxu0 %v1549
    %1595 = vmatprep.subr.bf16.mxu0 0
    %1596 = vmatpush1.bf16.msra.mxu0 %v1550
    %1597 = vmatprep.subr.bf16.mxu0 0
    %1598 = vmatpush1.bf16.msra.mxu0 %v1551
    %1599 = vmatprep.subr.bf16.mxu0 0
    %1600 = vmatpush1.bf16.msra.mxu0 %v1552
    %1601 = vmatprep.mubr.bf16.mxu0 %v1465
    %1602 = vmatmul.mubr.bf16.gmra.mrb[0].mxu0 %v1464
    %v1603 = vpop.f32.mrb[0].mxu0
    %v1604 = vadd.f32 %v1471, %v1603
    %v1605 = vpop.f32.mrb[0].mxu0
    %v1606 = vpop.f32.mrb[0].mxu0
    %v1607 = vpop.f32.mrb[0].mxu0
    %1608 = vdwg.mxu0
    %v1609 = vsub.f32 0.0, %v1604
    %v1610 = vmul.f32 %v1609, 1.442695
    %v1611 = vpow.pop %v1610
    %v1612 = vadd.f32 %v1611, 1.0
    %v1613 = vrcp.pop %v1612
    %1614 = vst.msk [vmem:[%s18] sm:$0xff] %vm128, %v1613
    // Predicated region
    $region86: #{conv_vae_forward.1} parent=1 // pred_check
      _
    $region87: #{conv_vae_forward.1} parent=1 // pred_check_branch
      %1616 = sbr.rel (0) target = $region89
    $region88: #{conv_vae_forward.1} parent=1 // pred_region
      _
    $region89: #{conv_vae_forward.1} parent=1 // pred_fallthru
      _
    // Predicated region
    $region90: #{conv_vae_forward.1} parent=1 // pred_check
      _
    $region91: #{conv_vae_forward.1} parent=1 // pred_check_branch
      %1618 = sbr.rel (0) target = $region93
    $region92: #{conv_vae_forward.1} parent=1 // pred_region
      _
    $region93: #{conv_vae_forward.1} parent=1 // pred_fallthru
      _
    // Predicated region
    $region94: #{conv_vae_forward.1} parent=1 // pred_check
      _
    $region95: #{conv_vae_forward.1} parent=1 // pred_check_branch
      %1620 = sbr.rel (0) target = $region97
    $region96: #{conv_vae_forward.1} parent=1 // pred_region
      _
    $region97: #{conv_vae_forward.1} parent=1 // pred_fallthru
      _
    // Predicated region
    $region98: #{conv_vae_forward.1} parent=1 // pred_check
      _
    $region99: #{conv_vae_forward.1} parent=1 // pred_check_branch
      %1622 = sbr.rel (0) target = $region101
    $region100: #{conv_vae_forward.1} parent=1 // pred_region
      _
    $region101: #{conv_vae_forward.1} parent=1 // pred_fallthru
      _
    %1623 = vsyncpa [#allocation3], 1
    %1624 = vsyncpa [#allocation5], 1

</llo_original>
